<compile_context>
chip_gen: v7x
topology: tpu7x:2x2x1
jax: 0.10.0
libtpu: 0.0.40
codegen_flags: <defaults>
</compile_context>

<pallas_src>
import functools

import jax
import jax.numpy as jnp
from jax.experimental import pallas as pl
from jax.experimental.pallas import tpu as pltpu


def _ffn_kernel(x_ref, w1_ref, b1_ref, w2_ref, b2_ref, gamma_ref, beta_ref,
                o_ref, acc_ref, *, activation: str, normalize_before: bool,
                eps: float):
    # x_ref: (tm, d_model)  w1_ref: (d_model, tk_ff)  w2_ref: (tk_ff, d_model)
    # acc_ref: (tm, d_model) f32 accumulator across the d_ff (k) grid axis.
    k = pl.program_id(1)

    @pl.when(k == 0)
    def _init():
        acc_ref[...] = jnp.zeros_like(acc_ref)

    def layer_norm(v):  # v: (tm, d_model) f32
        mean = jnp.mean(v, axis=-1, keepdims=True)
        centered = v - mean
        var = jnp.mean(centered * centered, axis=-1, keepdims=True)
        return (centered * jax.lax.rsqrt(var + eps)
                * gamma_ref[...].astype(jnp.float32)
                + beta_ref[...].astype(jnp.float32))

    if normalize_before:
        # LN(x) is cheap VPU work vs the MXU matmuls -> recomputed per k step.
        ff_in = layer_norm(x_ref[...].astype(jnp.float32)).astype(w1_ref.dtype)
    else:
        # Feed the input tile straight to the MXU (no f32 round-trip).
        ff_in = x_ref[...].astype(w1_ref.dtype)

    # linear1 chunk + activation (MXU matmul, f32 accumulation).
    h = jnp.dot(ff_in, w1_ref[...], preferred_element_type=jnp.float32)
    h = h + b1_ref[...].astype(jnp.float32)
    if activation == "relu":
        h = jnp.maximum(h, 0.0)
    elif activation == "gelu":
        # TODO(synk): PyTorch F.gelu defaults to exact erf; tanh approximation is
        # used here for Mosaic portability (max abs deviation ~1e-3).
        h = jax.nn.gelu(h, approximate=True)
    else:
        # TODO(synk): 'glu' halves the feedforward width; not implemented here.
        raise NotImplementedError(activation)

    # linear2 chunk, accumulated over the d_ff tiles.
    acc_ref[...] += jnp.dot(h.astype(w2_ref.dtype), w2_ref[...],
                            preferred_element_type=jnp.float32)

    @pl.when(k == pl.num_programs(1) - 1)
    def _finalize():
        y = (acc_ref[...] + b2_ref[...].astype(jnp.float32)
             + x_ref[...].astype(jnp.float32))      # dropout p=0 -> identity
        if not normalize_before:
            y = layer_norm(y)
        o_ref[...] = y.astype(o_ref.dtype)


def _round_up(v: int, m: int) -> int:
    return ((v + m - 1) // m) * m


def _choose_tiles(M, d_model, d_ff, x_bytes, o_bytes, w_bytes, row_align,
                  tm_target, budget):
    """Pick (tm, tk_ff) and return them with an estimated VMEM footprint."""

    def footprint(tm, tk):
        n_k = pl.cdiv(d_ff, tk)
        nbuf_w = 1 if n_k == 1 else 2            # resident weights single-buffered
        return (2 * tm * d_model * (x_bytes + o_bytes)        # x / out tiles (dbl buf)
                + nbuf_w * (2 * d_model * tk * w_bytes + tk * 4)  # W1, W2, b1 blocks
                + 3 * d_model * 4                              # b2, gamma, beta
                + tm * d_model * 4                             # f32 accumulator scratch
                + tm * tk * 4)                                 # live f32 hidden act

    tm = _round_up(min(tm_target, _round_up(M, row_align)), row_align)
    # v7x has 2 TensorCores: give the 'parallel' row axis at least 2 grid steps.
    if pl.cdiv(M, tm) < 2 and M > row_align:
        tm = _round_up(pl.cdiv(M, 2), row_align)

    tk = d_ff
    # Only halve while tk stays a 128-multiple divisor of d_ff (reduction-axis
    # tiles must tile d_ff exactly; a partial k block would pollute the acc).
    while footprint(tm, tk) > budget and tk % 2 == 0 and (tk // 2) % 128 == 0:
        tk //= 2
    while footprint(tm, tk) > budget and tm > row_align:
        tm = max(row_align, _round_up(tm // 2, row_align))
    return tm, tk, footprint(tm, tk)


def ffn_layer_forward(tgt, params, *, activation="relu", normalize_before=False,
                      dropout=0.0, eps=1e-5, tm=1024):
    """Fused FFNLayer forward.  tgt: (..., d_model) -> (..., d_model)."""
    if activation not in ("relu", "gelu"):
        # TODO(synk): 'glu' changes the feedforward width; not supported.
        raise NotImplementedError(f"activation={activation!r}")
    if dropout != 0.0:
        # TODO(synk): training-mode dropout (p>0) not implemented; p=0 is identity.
        raise NotImplementedError("dropout > 0 not supported (eval mode only)")

    w1, b1, w2, b2, gamma, beta = (params[k] for k in
                                   ("w1", "b1", "w2", "b2", "gamma", "beta"))
    d_model = tgt.shape[-1]
    d_ff = w1.shape[1]
    assert w1.shape == (d_model, d_ff) and w2.shape == (d_ff, d_model)

    orig_shape = tgt.shape
    x2d = tgt.reshape(-1, d_model)
    M = x2d.shape[0]

    x_bytes = x2d.dtype.itemsize
    o_bytes = x_bytes
    w_bytes = jnp.dtype(w1.dtype).itemsize
    row_align = 16 if x_bytes == 2 else 8        # bf16 packs 2 rows / sublane

    # Generation-aware VMEM budget (v5e/v6e: 128 MiB, v7x: 64 MiB per TC).
    try:
        vmem_cap = int(pltpu.get_tpu_info().vmem_capacity_bytes)
    except Exception:
        vmem_cap = 64 * 1024 * 1024              # conservative (v7x per-TC VMEM)
    budget = int(0.6 * vmem_cap)
    vmem_ceiling = int(0.85 * vmem_cap)

    tm_eff, tk_ff, fp_bytes = _choose_tiles(M, d_model, d_ff, x_bytes, o_bytes,
                                            w_bytes, row_align, tm, budget)
    n_i = pl.cdiv(M, tm_eff)                     # no host-side pad: OOB rows dropped
    n_k = d_ff // tk_ff

    vmem_limit = int(min(max(2 * fp_bytes, 32 * 1024 * 1024), vmem_ceiling))

    b1_2d = b1.reshape(1, d_ff).astype(jnp.float32)
    b2_2d = b2.reshape(1, d_model).astype(jnp.float32)
    gamma_2d = gamma.reshape(1, d_model).astype(jnp.float32)
    beta_2d = beta.reshape(1, d_model).astype(jnp.float32)

    weight_passes = 1 if n_k == 1 else n_i
    flops = 4 * M * d_model * d_ff + 10 * M * d_model
    transcendentals = M * d_ff if activation == "gelu" else M
    bytes_accessed = (M * d_model * (x_bytes + o_bytes)
                      + weight_passes * 2 * d_model * d_ff * w_bytes
                      + (d_ff + 3 * d_model) * 4)
    cost = pl.CostEstimate(flops=flops, transcendentals=transcendentals,
                           bytes_accessed=bytes_accessed)

    kernel = functools.partial(_ffn_kernel, activation=activation,
                               normalize_before=normalize_before, eps=eps)

    def build_and_run(single_buffer_resident):
        def const_spec(shape):
            # Constant index_map -> fetched once; single-buffer to halve VMEM.
            if single_buffer_resident:
                return pl.BlockSpec(shape, lambda i, k: (0, 0),
                                    pipeline_mode=pl.Buffered(1))
            return pl.BlockSpec(shape, lambda i, k: (0, 0))

        if n_k == 1:                              # weights fully resident
            w1_spec = const_spec((d_model, tk_ff))
            b1_spec = const_spec((1, tk_ff))
            w2_spec = const_spec((tk_ff, d_model))
        else:                                     # streamed over the k axis
            w1_spec = pl.BlockSpec((d_model, tk_ff), lambda i, k: (0, k))
            b1_spec = pl.BlockSpec((1, tk_ff), lambda i, k: (0, k))
            w2_spec = pl.BlockSpec((tk_ff, d_model), lambda i, k: (k, 0))

        return pl.pallas_call(
            kernel,
            out_shape=jax.ShapeDtypeStruct((M, d_model), tgt.dtype),
            grid_spec=pltpu.PrefetchScalarGridSpec(
                num_scalar_prefetch=0,
                grid=(n_i, n_k),
                in_specs=[
                    pl.BlockSpec((tm_eff, d_model), lambda i, k: (i, 0)),  # x tile
                    w1_spec, b1_spec, w2_spec,
                    const_spec((1, d_model)),                              # b2
                    const_spec((1, d_model)),                              # gamma
                    const_spec((1, d_model)),                              # beta
                ],
                out_specs=pl.BlockSpec((tm_eff, d_model), lambda i, k: (i, 0)),
                scratch_shapes=[pltpu.VMEM((tm_eff, d_model), jnp.float32)],
            ),
            compiler_params=pltpu.CompilerParams(
                dimension_semantics=("parallel", "arbitrary"),
                vmem_limit_bytes=vmem_limit,
            ),
            cost_estimate=cost,
        )(x2d, w1, b1_2d, w2, b2_2d, gamma_2d, beta_2d)

    try:
        out = build_and_run(True)
    except Exception:
        # pipeline_mode=pl.Buffered(1) unsupported on this jax version ->
        # fall back to default double-buffered resident operands.
        out = build_and_run(False)

    return out.reshape(orig_shape)


def init_ffn_params(key, d_model, dim_feedforward, param_dtype=jnp.bfloat16):
    """Matches FFNLayer init shapes/semantics: xavier_uniform_ for weight
    matrices, PyTorch Linear-default uniform for biases, LayerNorm gamma=1 /
    beta=0.  Weights are stored pre-transposed as (in, out) and, by default,
    as bf16 MXU operands (biases / LN params stay f32)."""
    k1, k2, k3, k4 = jax.random.split(key, 4)
    bound = (6.0 / (d_model + dim_feedforward)) ** 0.5       # xavier uniform
    w1 = jax.random.uniform(k1, (d_model, dim_feedforward), jnp.float32,
                            -bound, bound)
    w2 = jax.random.uniform(k2, (dim_feedforward, d_model), jnp.float32,
                            -bound, bound)
    b1 = jax.random.uniform(k3, (dim_feedforward,), jnp.float32,
                            -1.0 / d_model ** 0.5, 1.0 / d_model ** 0.5)
    b2 = jax.random.uniform(k4, (d_model,), jnp.float32,
                            -1.0 / dim_feedforward ** 0.5,
                            1.0 / dim_feedforward ** 0.5)
    return dict(w1=w1.astype(param_dtype), b1=b1,
                w2=w2.astype(param_dtype), b2=b2,
                gamma=jnp.ones((d_model,), jnp.float32),
                beta=jnp.zeros((d_model,), jnp.float32))


def ffn_reference(tgt, params, *, activation="relu", normalize_before=False,
                  eps=1e-5):
    """Pure-JAX reference (f32 HIGHEST-precision matmuls as the gold standard;
    gelu uses exact erf, matching PyTorch F.gelu)."""
    w1 = params["w1"].astype(jnp.float32)
    w2 = params["w2"].astype(jnp.float32)
    b1, b2, gamma, beta = (params[k] for k in ("b1", "b2", "gamma", "beta"))

    def layer_norm(v):
        mean = v.mean(-1, keepdims=True)
        var = ((v - mean) ** 2).mean(-1, keepdims=True)
        return (v - mean) * jax.lax.rsqrt(var + eps) * gamma + beta

    ff_in = layer_norm(tgt) if normalize_before else tgt
    h = jnp.dot(ff_in, w1, precision=jax.lax.Precision.HIGHEST) + b1
    if activation == "relu":
        h = jnp.maximum(h, 0.0)
    else:
        h = jax.nn.gelu(h, approximate=False)
    y = tgt + (jnp.dot(h, w2, precision=jax.lax.Precision.HIGHEST) + b2)
    return y if normalize_before else layer_norm(y)


if __name__ == "__main__":
    key = jax.random.PRNGKey(0)
    k_x, k_p = jax.random.split(key)

    batch, seq = 2, 8
    d_model, dim_feedforward = 256, 512   # lane-dense (multiples of 128)

    tgt = jax.random.normal(k_x, (batch, seq, d_model), jnp.float32)
    params = init_ffn_params(k_p, d_model, dim_feedforward)          # bf16 weights
    params_f32 = init_ffn_params(k_p, d_model, dim_feedforward,
                                 param_dtype=jnp.float32)

    # Default path (module defaults: relu, dropout=0, normalize_before=False),
    # bf16 MXU operands, f32 accumulation / residual / LayerNorm.
    ref = ffn_reference(tgt, params)
    out = jax.block_until_ready(ffn_layer_forward(tgt, params))
    assert out.shape == tgt.shape
    assert jnp.allclose(out, ref, atol=5e-2, rtol=5e-2), \
        float(jnp.max(jnp.abs(out - ref)))

    # f32-weight path.
    ref_f32 = ffn_reference(tgt, params_f32)
    out_f32 = jax.block_until_ready(ffn_layer_forward(tgt, params_f32))
    assert jnp.allclose(out_f32, ref_f32, atol=2e-2, rtol=2e-2), \
        float(jnp.max(jnp.abs(out_f32 - ref_f32)))

    # Pre-norm variant (normalize_before=True).
    ref_pre = ffn_reference(tgt, params, normalize_before=True)
    out_pre = jax.block_until_ready(
        ffn_layer_forward(tgt, params, normalize_before=True))
    assert jnp.allclose(out_pre, ref_pre, atol=5e-2, rtol=5e-2), \
        float(jnp.max(jnp.abs(out_pre - ref_pre)))

    # GELU variant (kernel uses tanh approx vs PyTorch-exact erf reference).
    ref_g = ffn_reference(tgt, params, activation="gelu")
    out_g = jax.block_until_ready(ffn_layer_forward(tgt, params, activation="gelu"))
    assert jnp.allclose(out_g, ref_g, atol=5e-2, rtol=5e-2), \
        float(jnp.max(jnp.abs(out_g - ref_g)))

    # Ragged row count (M=14, tm=8): trailing partial block handled by Pallas,
    # no host-side pad / slice.
    tgt_r = tgt[:, :7]
    ref_r = ffn_reference(tgt_r, params)
    out_r = jax.block_until_ready(ffn_layer_forward(tgt_r, params))
    assert out_r.shape == tgt_r.shape
    assert jnp.allclose(out_r, ref_r, atol=5e-2, rtol=5e-2), \
        float(jnp.max(jnp.abs(out_r - ref_r)))

    print("KERNEL_OK")
</pallas_src>

<mosaic_0001>
module attributes {stable_mosaic.version = 11 : i64} {
  func.func @_ffn_kernel(%arg0: i32, %arg1: i32, %arg2: memref<8x256xf32, #tpu.memory_space<vmem>>, %arg3: memref<256x512xbf16, #tpu.memory_space<vmem>>, %arg4: memref<1x512xf32, #tpu.memory_space<vmem>>, %arg5: memref<512x256xbf16, #tpu.memory_space<vmem>>, %arg6: memref<1x256xf32, #tpu.memory_space<vmem>>, %arg7: memref<1x256xf32, #tpu.memory_space<vmem>>, %arg8: memref<1x256xf32, #tpu.memory_space<vmem>>, %arg9: memref<8x256xf32, #tpu.memory_space<vmem>>, %arg10: memref<8x256xf32, #tpu.memory_space<vmem>>) attributes {dimension_semantics = [#tpu.dimension_semantics<parallel>, #tpu.dimension_semantics<arbitrary>], iteration_bounds = array<i64: 2, 1>, scalar_prefetch = 0 : i64, scratch_operands = 1 : i64, tpu.core_type = #tpu.core_type<tc>, window_params = [{transform_indices = @transform_0, window_bounds = array<i64: 8, 256>}, {pipeline_mode = #tpu.pipeline_mode<synchronous>, transform_indices = @transform_1, window_bounds = array<i64: 256, 512>}, {pipeline_mode = #tpu.pipeline_mode<synchronous>, transform_indices = @transform_2, window_bounds = array<i64: 1, 512>}, {pipeline_mode = #tpu.pipeline_mode<synchronous>, transform_indices = @transform_3, window_bounds = array<i64: 512, 256>}, {pipeline_mode = #tpu.pipeline_mode<synchronous>, transform_indices = @transform_4, window_bounds = array<i64: 1, 256>}, {pipeline_mode = #tpu.pipeline_mode<synchronous>, transform_indices = @transform_5, window_bounds = array<i64: 1, 256>}, {pipeline_mode = #tpu.pipeline_mode<synchronous>, transform_indices = @transform_6, window_bounds = array<i64: 1, 256>}, {transform_indices = @transform_7, window_bounds = array<i64: 8, 256>}]} {
    %c0_i32 = arith.constant 0 : i32
    %0 = arith.cmpi eq, %arg1, %c0_i32 : i32
    %1 = arith.extui %0 : i1 to i32
    %c0_i32_0 = arith.constant 0 : i32
    %2 = arith.cmpi ne, %1, %c0_i32_0 : i32
    scf.if %2 {
      %cst_16 = arith.constant 0.000000e+00 : f32
      %21 = vector.broadcast %cst_16 : f32 to vector<8x256xf32>
      %c0_17 = arith.constant 0 : index
      %c0_18 = arith.constant 0 : index
      %22 = vector.load %arg10[%c0_17, %c0_18] : memref<8x256xf32, #tpu.memory_space<vmem>>, vector<8x256xf32>
      tpu.vector_store %arg10[%c0_17, %c0_18], %21 {strides = array<i32>} : memref<8x256xf32, #tpu.memory_space<vmem>>, vector<8x256xf32>,
    } else {
    }
    %c0 = arith.constant 0 : index
    %c0_1 = arith.constant 0 : index
    %3 = vector.load %arg2[%c0, %c0_1] : memref<8x256xf32, #tpu.memory_space<vmem>>, vector<8x256xf32>
    %4 = arith.truncf %3 : vector<8x256xf32> to vector<8x256xbf16>
    %c0_2 = arith.constant 0 : index
    %c0_3 = arith.constant 0 : index
    %5 = vector.load %arg3[%c0_2, %c0_3] : memref<256x512xbf16, #tpu.memory_space<vmem>>, vector<256x512xbf16>
    %cst = arith.constant dense<0.000000e+00> : vector<8x512xf32>
    %6 = tpu.matmul %4, %5, %cst {dimension_numbers = #tpu.dot_dimension_numbers<[1], [0], [0], [1], [0, 0, 1, 1], [], []>} : vector<8x256xbf16>, vector<256x512xbf16>, vector<8x512xf32> -> vector<8x512xf32>
    %c0_4 = arith.constant 0 : index
    %c0_5 = arith.constant 0 : index
    %7 = vector.load %arg4[%c0_4, %c0_5] : memref<1x512xf32, #tpu.memory_space<vmem>>, vector<1x512xf32>
    %8 = vector.broadcast %7 : vector<1x512xf32> to vector<8x512xf32>
    %9 = arith.addf %6, %8 : vector<8x512xf32>
    %cst_6 = arith.constant 0.000000e+00 : f32
    %10 = vector.broadcast %cst_6 : f32 to vector<8x512xf32>
    %11 = arith.maximumf %9, %10 : vector<8x512xf32>
    %c0_7 = arith.constant 0 : index
    %c0_8 = arith.constant 0 : index
    %12 = vector.load %arg10[%c0_7, %c0_8] : memref<8x256xf32, #tpu.memory_space<vmem>>, vector<8x256xf32>
    %13 = arith.truncf %11 : vector<8x512xf32> to vector<8x512xbf16>
    %c0_9 = arith.constant 0 : index
    %c0_10 = arith.constant 0 : index
    %14 = vector.load %arg5[%c0_9, %c0_10] : memref<512x256xbf16, #tpu.memory_space<vmem>>, vector<512x256xbf16>
    %cst_11 = arith.constant dense<0.000000e+00> : vector<8x256xf32>
    %15 = tpu.matmul %13, %14, %cst_11 {dimension_numbers = #tpu.dot_dimension_numbers<[1], [0], [0], [1], [0, 0, 1, 1], [], []>} : vector<8x512xbf16>, vector<512x256xbf16>, vector<8x256xf32> -> vector<8x256xf32>
    %16 = arith.addf %12, %15 : vector<8x256xf32>
    %c0_12 = arith.constant 0 : index
    %c0_13 = arith.constant 0 : index
    %17 = vector.load %arg10[%c0_12, %c0_13] : memref<8x256xf32, #tpu.memory_space<vmem>>, vector<8x256xf32>
    tpu.vector_store %arg10[%c0_12, %c0_13], %16 {strides = array<i32>} : memref<8x256xf32, #tpu.memory_space<vmem>>, vector<8x256xf32>,
    %c0_i32_14 = arith.constant 0 : i32
    %18 = arith.cmpi eq, %arg1, %c0_i32_14 : i32
    %19 = arith.extui %18 : i1 to i32
    %c0_i32_15 = arith.constant 0 : i32
    %20 = arith.cmpi ne, %19, %c0_i32_15 : i32
    scf.if %20 {
      %c0_16 = arith.constant 0 : index
      %c0_17 = arith.constant 0 : index
      %21 = vector.load %arg10[%c0_16, %c0_17] : memref<8x256xf32, #tpu.memory_space<vmem>>, vector<8x256xf32>
      %c0_18 = arith.constant 0 : index
      %c0_19 = arith.constant 0 : index
      %22 = vector.load %arg6[%c0_18, %c0_19] : memref<1x256xf32, #tpu.memory_space<vmem>>, vector<1x256xf32>
      %23 = vector.broadcast %22 : vector<1x256xf32> to vector<8x256xf32>
      %24 = arith.addf %21, %23 : vector<8x256xf32>
      %c0_20 = arith.constant 0 : index
      %c0_21 = arith.constant 0 : index
      %25 = vector.load %arg2[%c0_20, %c0_21] : memref<8x256xf32, #tpu.memory_space<vmem>>, vector<8x256xf32>
      %26 = arith.addf %24, %25 : vector<8x256xf32>
      %cst_22 = arith.constant dense<0.000000e+00> : vector<8xf32>
      %27 = vector.multi_reduction <add>, %26, %cst_22 [1] : vector<8x256xf32> to vector<8xf32>
      %28 = vector.shape_cast %27 : vector<8xf32> to vector<8x1xf32>
      %cst_23 = arith.constant 2.560000e+02 : f32
      %29 = vector.broadcast %cst_23 : f32 to vector<8x1xf32>
      %30 = arith.divf %28, %29 : vector<8x1xf32>
      %31 = vector.broadcast %30 : vector<8x1xf32> to vector<8x256xf32>
      %32 = arith.subf %26, %31 : vector<8x256xf32>
      %33 = arith.mulf %32, %32 : vector<8x256xf32>
      %cst_24 = arith.constant dense<0.000000e+00> : vector<8xf32>
      %34 = vector.multi_reduction <add>, %33, %cst_24 [1] : vector<8x256xf32> to vector<8xf32>
      %35 = vector.shape_cast %34 : vector<8xf32> to vector<8x1xf32>
      %cst_25 = arith.constant 2.560000e+02 : f32
      %36 = vector.broadcast %cst_25 : f32 to vector<8x1xf32>
      %37 = arith.divf %35, %36 : vector<8x1xf32>
      %cst_26 = arith.constant 9.99999974E-6 : f32
      %38 = vector.broadcast %cst_26 : f32 to vector<8x1xf32>
      %39 = arith.addf %37, %38 : vector<8x1xf32>
      %40 = math.rsqrt %39 : vector<8x1xf32>
      %41 = vector.broadcast %40 : vector<8x1xf32> to vector<8x256xf32>
      %42 = arith.mulf %32, %41 : vector<8x256xf32>
      %c0_27 = arith.constant 0 : index
      %c0_28 = arith.constant 0 : index
      %43 = vector.load %arg7[%c0_27, %c0_28] : memref<1x256xf32, #tpu.memory_space<vmem>>, vector<1x256xf32>
      %44 = vector.broadcast %43 : vector<1x256xf32> to vector<8x256xf32>
      %45 = arith.mulf %42, %44 : vector<8x256xf32>
      %c0_29 = arith.constant 0 : index
      %c0_30 = arith.constant 0 : index
      %46 = vector.load %arg8[%c0_29, %c0_30] : memref<1x256xf32, #tpu.memory_space<vmem>>, vector<1x256xf32>
      %47 = vector.broadcast %46 : vector<1x256xf32> to vector<8x256xf32>
      %48 = arith.addf %45, %47 : vector<8x256xf32>
      %c0_31 = arith.constant 0 : index
      %c0_32 = arith.constant 0 : index
      %49 = vector.load %arg9[%c0_31, %c0_32] : memref<8x256xf32, #tpu.memory_space<vmem>>, vector<8x256xf32>
      tpu.vector_store %arg9[%c0_31, %c0_32], %48 {strides = array<i32>} : memref<8x256xf32, #tpu.memory_space<vmem>>, vector<8x256xf32>,
    } else {
    }
    return
  }
  func.func @transform_0(%arg0: i32, %arg1: i32) -> (i32, i32) {
    %c0_i32 = arith.constant 0 : i32
    %c0_i32_0 = arith.constant 0 : i32
    return %arg0, %c0_i32 : i32, i32
  }
  func.func @transform_1(%arg0: i32, %arg1: i32) -> (i32, i32) {
    %c0_i32 = arith.constant 0 : i32
    %c0_i32_0 = arith.constant 0 : i32
    %c0_i32_1 = arith.constant 0 : i32
    return %c0_i32, %c0_i32_0 : i32, i32
  }
  func.func @transform_2(%arg0: i32, %arg1: i32) -> (i32, i32) {
    %c0_i32 = arith.constant 0 : i32
    %c0_i32_0 = arith.constant 0 : i32
    %c0_i32_1 = arith.constant 0 : i32
    return %c0_i32, %c0_i32_0 : i32, i32
  }
  func.func @transform_3(%arg0: i32, %arg1: i32) -> (i32, i32) {
    %c0_i32 = arith.constant 0 : i32
    %c0_i32_0 = arith.constant 0 : i32
    %c0_i32_1 = arith.constant 0 : i32
    return %c0_i32, %c0_i32_0 : i32, i32
  }
  func.func @transform_4(%arg0: i32, %arg1: i32) -> (i32, i32) {
    %c0_i32 = arith.constant 0 : i32
    %c0_i32_0 = arith.constant 0 : i32
    %c0_i32_1 = arith.constant 0 : i32
    return %c0_i32, %c0_i32_0 : i32, i32
  }
  func.func @transform_5(%arg0: i32, %arg1: i32) -> (i32, i32) {
    %c0_i32 = arith.constant 0 : i32
    %c0_i32_0 = arith.constant 0 : i32
    %c0_i32_1 = arith.constant 0 : i32
    return %c0_i32, %c0_i32_0 : i32, i32
  }
  func.func @transform_6(%arg0: i32, %arg1: i32) -> (i32, i32) {
    %c0_i32 = arith.constant 0 : i32
    %c0_i32_0 = arith.constant 0 : i32
    %c0_i32_1 = arith.constant 0 : i32
    return %c0_i32, %c0_i32_0 : i32, i32
  }
  func.func @transform_7(%arg0: i32, %arg1: i32) -> (i32, i32) {
    %c0_i32 = arith.constant 0 : i32
    %c0_i32_0 = arith.constant 0 : i32
    return %arg0, %c0_i32 : i32, i32
  }
}

module attributes {stable_mosaic.version = 11 : i64} {
  func.func @_ffn_kernel(%arg0: i32, %arg1: i32, %arg2: memref<8x256xf32, #tpu.memory_space<vmem>>, %arg3: memref<256x512xbf16, #tpu.memory_space<vmem>>, %arg4: memref<1x512xf32, #tpu.memory_space<vmem>>, %arg5: memref<512x256xbf16, #tpu.memory_space<vmem>>, %arg6: memref<1x256xf32, #tpu.memory_space<vmem>>, %arg7: memref<1x256xf32, #tpu.memory_space<vmem>>, %arg8: memref<1x256xf32, #tpu.memory_space<vmem>>, %arg9: memref<8x256xf32, #tpu.memory_space<vmem>>, %arg10: memref<8x256xf32, #tpu.memory_space<vmem>>) attributes {dimension_semantics = [#tpu.dimension_semantics<parallel>, #tpu.dimension_semantics<arbitrary>], iteration_bounds = array<i64: 2, 1>, scalar_prefetch = 0 : i64, scratch_operands = 1 : i64, tpu.core_type = #tpu.core_type<tc>, window_params = [{transform_indices = @transform_0, window_bounds = array<i64: 8, 256>}, {pipeline_mode = #tpu.pipeline_mode<synchronous>, transform_indices = @transform_1, window_bounds = array<i64: 256, 512>}, {pipeline_mode = #tpu.pipeline_mode<synchronous>, transform_indices = @transform_2, window_bounds = array<i64: 1, 512>}, {pipeline_mode = #tpu.pipeline_mode<synchronous>, transform_indices = @transform_3, window_bounds = array<i64: 512, 256>}, {pipeline_mode = #tpu.pipeline_mode<synchronous>, transform_indices = @transform_4, window_bounds = array<i64: 1, 256>}, {pipeline_mode = #tpu.pipeline_mode<synchronous>, transform_indices = @transform_5, window_bounds = array<i64: 1, 256>}, {pipeline_mode = #tpu.pipeline_mode<synchronous>, transform_indices = @transform_6, window_bounds = array<i64: 1, 256>}, {transform_indices = @transform_7, window_bounds = array<i64: 8, 256>}]} {
    %c0_i32 = arith.constant 0 : i32
    %0 = arith.cmpi eq, %arg1, %c0_i32 : i32
    %1 = arith.extui %0 : i1 to i32
    %c0_i32_0 = arith.constant 0 : i32
    %2 = arith.cmpi ne, %1, %c0_i32_0 : i32
    scf.if %2 {
      %cst_16 = arith.constant 0.000000e+00 : f32
      %21 = vector.broadcast %cst_16 : f32 to vector<8x256xf32>
      %c0_17 = arith.constant 0 : index
      %c0_18 = arith.constant 0 : index
      %22 = vector.load %arg10[%c0_17, %c0_18] : memref<8x256xf32, #tpu.memory_space<vmem>>, vector<8x256xf32>
      tpu.vector_store %arg10[%c0_17, %c0_18], %21 {strides = array<i32>} : memref<8x256xf32, #tpu.memory_space<vmem>>, vector<8x256xf32>,
    } else {
    }
    %c0 = arith.constant 0 : index
    %c0_1 = arith.constant 0 : index
    %3 = vector.load %arg2[%c0, %c0_1] : memref<8x256xf32, #tpu.memory_space<vmem>>, vector<8x256xf32>
    %4 = arith.truncf %3 : vector<8x256xf32> to vector<8x256xbf16>
    %c0_2 = arith.constant 0 : index
    %c0_3 = arith.constant 0 : index
    %5 = vector.load %arg3[%c0_2, %c0_3] : memref<256x512xbf16, #tpu.memory_space<vmem>>, vector<256x512xbf16>
    %cst = arith.constant dense<0.000000e+00> : vector<8x512xf32>
    %6 = tpu.matmul %4, %5, %cst {dimension_numbers = #tpu.dot_dimension_numbers<[1], [0], [0], [1], [0, 0, 1, 1], [], []>} : vector<8x256xbf16>, vector<256x512xbf16>, vector<8x512xf32> -> vector<8x512xf32>
    %c0_4 = arith.constant 0 : index
    %c0_5 = arith.constant 0 : index
    %7 = vector.load %arg4[%c0_4, %c0_5] : memref<1x512xf32, #tpu.memory_space<vmem>>, vector<1x512xf32>
    %8 = vector.broadcast %7 : vector<1x512xf32> to vector<8x512xf32>
    %9 = arith.addf %6, %8 : vector<8x512xf32>
    %cst_6 = arith.constant 0.000000e+00 : f32
    %10 = vector.broadcast %cst_6 : f32 to vector<8x512xf32>
    %11 = arith.maximumf %9, %10 : vector<8x512xf32>
    %c0_7 = arith.constant 0 : index
    %c0_8 = arith.constant 0 : index
    %12 = vector.load %arg10[%c0_7, %c0_8] : memref<8x256xf32, #tpu.memory_space<vmem>>, vector<8x256xf32>
    %13 = arith.truncf %11 : vector<8x512xf32> to vector<8x512xbf16>
    %c0_9 = arith.constant 0 : index
    %c0_10 = arith.constant 0 : index
    %14 = vector.load %arg5[%c0_9, %c0_10] : memref<512x256xbf16, #tpu.memory_space<vmem>>, vector<512x256xbf16>
    %cst_11 = arith.constant dense<0.000000e+00> : vector<8x256xf32>
    %15 = tpu.matmul %13, %14, %cst_11 {dimension_numbers = #tpu.dot_dimension_numbers<[1], [0], [0], [1], [0, 0, 1, 1], [], []>} : vector<8x512xbf16>, vector<512x256xbf16>, vector<8x256xf32> -> vector<8x256xf32>
    %16 = arith.addf %12, %15 : vector<8x256xf32>
    %c0_12 = arith.constant 0 : index
    %c0_13 = arith.constant 0 : index
    %17 = vector.load %arg10[%c0_12, %c0_13] : memref<8x256xf32, #tpu.memory_space<vmem>>, vector<8x256xf32>
    tpu.vector_store %arg10[%c0_12, %c0_13], %16 {strides = array<i32>} : memref<8x256xf32, #tpu.memory_space<vmem>>, vector<8x256xf32>,
    %c0_i32_14 = arith.constant 0 : i32
    %18 = arith.cmpi eq, %arg1, %c0_i32_14 : i32
    %19 = arith.extui %18 : i1 to i32
    %c0_i32_15 = arith.constant 0 : i32
    %20 = arith.cmpi ne, %19, %c0_i32_15 : i32
    scf.if %20 {
      %c0_16 = arith.constant 0 : index
      %c0_17 = arith.constant 0 : index
      %21 = vector.load %arg10[%c0_16, %c0_17] : memref<8x256xf32, #tpu.memory_space<vmem>>, vector<8x256xf32>
      %c0_18 = arith.constant 0 : index
      %c0_19 = arith.constant 0 : index
      %22 = vector.load %arg6[%c0_18, %c0_19] : memref<1x256xf32, #tpu.memory_space<vmem>>, vector<1x256xf32>
      %23 = vector.broadcast %22 : vector<1x256xf32> to vector<8x256xf32>
      %24 = arith.addf %21, %23 : vector<8x256xf32>
      %c0_20 = arith.constant 0 : index
      %c0_21 = arith.constant 0 : index
      %25 = vector.load %arg2[%c0_20, %c0_21] : memref<8x256xf32, #tpu.memory_space<vmem>>, vector<8x256xf32>
      %26 = arith.addf %24, %25 : vector<8x256xf32>
      %cst_22 = arith.constant dense<0.000000e+00> : vector<8xf32>
      %27 = vector.multi_reduction <add>, %26, %cst_22 [1] : vector<8x256xf32> to vector<8xf32>
      %28 = vector.shape_cast %27 : vector<8xf32> to vector<8x1xf32>
      %cst_23 = arith.constant 2.560000e+02 : f32
      %29 = vector.broadcast %cst_23 : f32 to vector<8x1xf32>
      %30 = arith.divf %28, %29 : vector<8x1xf32>
      %31 = vector.broadcast %30 : vector<8x1xf32> to vector<8x256xf32>
      %32 = arith.subf %26, %31 : vector<8x256xf32>
      %33 = arith.mulf %32, %32 : vector<8x256xf32>
      %cst_24 = arith.constant dense<0.000000e+00> : vector<8xf32>
      %34 = vector.multi_reduction <add>, %33, %cst_24 [1] : vector<8x256xf32> to vector<8xf32>
      %35 = vector.shape_cast %34 : vector<8xf32> to vector<8x1xf32>
      %cst_25 = arith.constant 2.560000e+02 : f32
      %36 = vector.broadcast %cst_25 : f32 to vector<8x1xf32>
      %37 = arith.divf %35, %36 : vector<8x1xf32>
      %cst_26 = arith.constant 9.99999974E-6 : f32
      %38 = vector.broadcast %cst_26 : f32 to vector<8x1xf32>
      %39 = arith.addf %37, %38 : vector<8x1xf32>
      %40 = math.rsqrt %39 : vector<8x1xf32>
      %41 = vector.broadcast %40 : vector<8x1xf32> to vector<8x256xf32>
      %42 = arith.mulf %32, %41 : vector<8x256xf32>
      %c0_27 = arith.constant 0 : index
      %c0_28 = arith.constant 0 : index
      %43 = vector.load %arg7[%c0_27, %c0_28] : memref<1x256xf32, #tpu.memory_space<vmem>>, vector<1x256xf32>
      %44 = vector.broadcast %43 : vector<1x256xf32> to vector<8x256xf32>
      %45 = arith.mulf %42, %44 : vector<8x256xf32>
      %c0_29 = arith.constant 0 : index
      %c0_30 = arith.constant 0 : index
      %46 = vector.load %arg8[%c0_29, %c0_30] : memref<1x256xf32, #tpu.memory_space<vmem>>, vector<1x256xf32>
      %47 = vector.broadcast %46 : vector<1x256xf32> to vector<8x256xf32>
      %48 = arith.addf %45, %47 : vector<8x256xf32>
      %c0_31 = arith.constant 0 : index
      %c0_32 = arith.constant 0 : index
      %49 = vector.load %arg9[%c0_31, %c0_32] : memref<8x256xf32, #tpu.memory_space<vmem>>, vector<8x256xf32>
      tpu.vector_store %arg9[%c0_31, %c0_32], %48 {strides = array<i32>} : memref<8x256xf32, #tpu.memory_space<vmem>>, vector<8x256xf32>,
    } else {
    }
    return
  }
  func.func @transform_0(%arg0: i32, %arg1: i32) -> (i32, i32) {
    %c0_i32 = arith.constant 0 : i32
    %c0_i32_0 = arith.constant 0 : i32
    return %arg0, %c0_i32 : i32, i32
  }
  func.func @transform_1(%arg0: i32, %arg1: i32) -> (i32, i32) {
    %c0_i32 = arith.constant 0 : i32
    %c0_i32_0 = arith.constant 0 : i32
    %c0_i32_1 = arith.constant 0 : i32
    return %c0_i32, %c0_i32_0 : i32, i32
  }
  func.func @transform_2(%arg0: i32, %arg1: i32) -> (i32, i32) {
    %c0_i32 = arith.constant 0 : i32
    %c0_i32_0 = arith.constant 0 : i32
    %c0_i32_1 = arith.constant 0 : i32
    return %c0_i32, %c0_i32_0 : i32, i32
  }
  func.func @transform_3(%arg0: i32, %arg1: i32) -> (i32, i32) {
    %c0_i32 = arith.constant 0 : i32
    %c0_i32_0 = arith.constant 0 : i32
    %c0_i32_1 = arith.constant 0 : i32
    return %c0_i32, %c0_i32_0 : i32, i32
  }
  func.func @transform_4(%arg0: i32, %arg1: i32) -> (i32, i32) {
    %c0_i32 = arith.constant 0 : i32
    %c0_i32_0 = arith.constant 0 : i32
    %c0_i32_1 = arith.constant 0 : i32
    return %c0_i32, %c0_i32_0 : i32, i32
  }
  func.func @transform_5(%arg0: i32, %arg1: i32) -> (i32, i32) {
    %c0_i32 = arith.constant 0 : i32
    %c0_i32_0 = arith.constant 0 : i32
    %c0_i32_1 = arith.constant 0 : i32
    return %c0_i32, %c0_i32_0 : i32, i32
  }
  func.func @transform_6(%arg0: i32, %arg1: i32) -> (i32, i32) {
    %c0_i32 = arith.constant 0 : i32
    %c0_i32_0 = arith.constant 0 : i32
    %c0_i32_1 = arith.constant 0 : i32
    return %c0_i32, %c0_i32_0 : i32, i32
  }
  func.func @transform_7(%arg0: i32, %arg1: i32) -> (i32, i32) {
    %c0_i32 = arith.constant 0 : i32
    %c0_i32_0 = arith.constant 0 : i32
    return %arg0, %c0_i32 : i32, i32
  }
}

</mosaic_0001>

<llo_original>
// kernel: tpu_custom_call.1
$region0: #{tpu_custom_call.1}
  #allocation0 [shape = 'u32[]', space=smem, size = 0x4, offset = 0x4, fixed_abs, tag = 'smem constant byte address 0x4 - core index']
  #allocation1 [shape = 'u32[144,128]{1,0:T(1,128)}', space=vmem, size = 0x12000, scoped, tag = 'internal scratch']
  #allocation2 [shape = 'f32[8,256]{1,0:T(8,128)}', space=vmem, size = 0x2000, scoped, tag = 'scratch operand']
  %s0 = inlined_call_operand.hbm [shape: f32[16,256], index: 0, kind: input, shape index: {}]
  %s1 = inlined_call_operand.hbm [shape: bf16[256,512], index: 1, kind: input, shape index: {}]
  %s2 = inlined_call_operand.vmem [shape: f32[1,512], index: 2, kind: input, shape index: {}]
  %s3 = inlined_call_operand.hbm [shape: bf16[512,256], index: 3, kind: input, shape index: {}]
  %s4 = inlined_call_operand.vmem [shape: f32[1,256], index: 4, kind: input, shape index: {}]
  %s5 = inlined_call_operand.vmem [shape: f32[1,256], index: 5, kind: input, shape index: {}]
  %s6 = inlined_call_operand.vmem [shape: f32[1,256], index: 6, kind: input, shape index: {}]
  %s7 = inlined_call_operand.hbm [shape: f32[16,256], index: 7, kind: output, shape index: {}]
  %s8 = sld [smem:[#allocation0]]
  $region81: #{tpu_custom_call.1} parent=0
    _
  %s10 = ssub.s32 1, %s8
  %s11 = scalar_select 0, %s10, %s8
  $region1: #{tpu_custom_call.1} parent=0
    #allocation3 [shape = 'u8[16384]{0}', space=vmem, size = 0x4000, scoped, tag = 'input window, operand 0']
    #allocation4 [shape = 's32[2]{0}', space=sflag, size = 0x8, scoped, tag = 'scoped memory for tpu_custom_call.1']
    #allocation5 [shape = 's32[2]{0}', space=sflag, size = 0x8, scoped, tag = 'scoped memory for tpu_custom_call.1']
    #allocation6 [shape = 'u8[262144]{0}', space=vmem, size = 0x40000, scoped, tag = 'input window, operand 1, single buffered']
    #allocation7 [shape = 's32[1]{0}', space=sflag, size = 0x4, scoped, tag = 'scoped memory for tpu_custom_call.1']
    #allocation8 [shape = 'u8[262144]{0}', space=vmem, size = 0x40000, scoped, tag = 'input window, operand 3, single buffered']
    #allocation9 [shape = 'u8[16384]{0}', space=vmem, size = 0x4000, scoped, tag = 'output window, operand 0']
    %12 = vsyncpa [#allocation4], 0
    %s13 = scalar_lea.sflag [#allocation4], 1
    %14 = vsyncpa %s13, 0
    %15 = vsyncpa [#allocation7], 0
    %16 = vsyncpa [#allocation5], 0
    %s17 = scalar_lea.sflag [#allocation5], 1
    %18 = vsyncpa %s17, 0
    loop: start=0, step=1, limit=4
    $region2: #{tpu_custom_call.1} parent=1 // loop_pre_header
      _
    $region3: #{tpu_custom_call.1} parent=1 // loop_header
      %s20 = sphi 0, %s24
      %p21 = scmp.ge.s32.totalorder %s20, 4
      %s27 = sphi 0, %s39
      %s28 = sphi 0, %s35
      %s29 = sphi 0, %s27
      %s30 = sphi 0, %s28
      %s31 = sphi 0, %s29
      %s32 = sphi 0, %s30
      %s42 = sphi 0, %s44
      %s45 = sphi 0, %s42
      %s46 = sphi 0, %s45
      %s62 = sphi 0, %s46
      %s66 = sphi 0, %s66
      %s68 = sphi 0, %s66
      %s69 = sphi 0, %s68
      %s83 = sphi 0, %s69
      %s87 = sphi 0, %s87
      %s89 = sphi 0, %s87
      %s90 = sphi 0, %s89
      %s104 = sphi 0, %s90
      %s108 = sphi 0, %s108
      %s110 = sphi 0, %s108
      %s111 = sphi 0, %s110
      %s125 = sphi 0, %s111
      %s129 = sphi 0, %s129
      %s131 = sphi 0, %s129
      %s132 = sphi 0, %s131
      %s146 = sphi 0, %s132
      %s150 = sphi 0, %s150
      %s152 = sphi 0, %s150
      %s153 = sphi 0, %s152
      %s167 = sphi 0, %s153
      %s171 = sphi 0, %s171
      %s173 = sphi 0, %s171
      %s174 = sphi 0, %s173
      %s188 = sphi 0, %s174
      %s194 = sphi 0, %s196
      %s197 = sphi 0, %s194
      %s198 = sphi 0, %s197
      %s214 = sphi 0, %s198
    $region4: #{tpu_custom_call.1} parent=1 // loop_header_branch
      %23 = sbr.rel (%p21) target = $region8
    $region5: #{tpu_custom_call.1} parent=1 // loop_body
      %s25 = ssub.s32 %s20, 1
      %s26 = ssub.s32 %s20, 2
      %s33 = sadd.s32 1, %s28
      %p34 = scmp.ge.s32.totalorder %s33, 1
      %s35 = scalar_select %p34, 0, %s33
      %s36 = sadd.s32 1, %s27
      %s37 = scalar_select %p34, %s36, %s27
      %p38 = scmp.ge.s32.totalorder %s37, 2
      %s39 = scalar_select %p38, 0, %s37
      %s40 = ssub.s32 %s27, %s39
      %p41 = scmp.eq.s32.totalorder %s40, 0
      %s43 = sadd.s32 %s42, 1
      %s44 = scalar_select %p41, %s42, %s43
      %p47 = pneg %p41
      %p48 = scmp.eq.s32.totalorder %s20, 1
      %p49 = por %p47, %p48
      %p50 = scmp.ne.s32.totalorder %s42, %s45
      %p51 = scmp.eq.s32.totalorder %s20, 0
      %p52 = por %p50, %p51
      %p53 = scmp.ne.s32.totalorder %s42, %s45
      %p54 = scmp.eq.s32.totalorder %s25, 1
      %p55 = por %p53, %p54
      %p56 = scmp.ne.s32.totalorder %s45, %s46
      %p57 = scmp.eq.s32.totalorder %s25, 0
      %p58 = por %p56, %p57
      %p59 = scmp.ne.s32.totalorder %s45, %s46
      %p60 = scmp.eq.s32.totalorder %s26, 1
      %p61 = por %p59, %p60
      %p63 = scmp.ne.s32.totalorder %s46, %s62
      %p64 = scmp.eq.s32.totalorder %s26, 0
      %p65 = por %p63, %p64
      %s67 = sadd.s32 %s66, 1
      %p70 = scmp.eq.s32.totalorder %s20, 1
      %p71 = scmp.ne.s32.totalorder %s66, %s68
      %p72 = scmp.eq.s32.totalorder %s20, 0
      %p73 = por %p71, %p72
      %p74 = scmp.ne.s32.totalorder %s66, %s68
      %p75 = scmp.eq.s32.totalorder %s25, 1
      %p76 = por %p74, %p75
      %p77 = scmp.ne.s32.totalorder %s68, %s69
      %p78 = scmp.eq.s32.totalorder %s25, 0
      %p79 = por %p77, %p78
      %p80 = scmp.ne.s32.totalorder %s68, %s69
      %p81 = scmp.eq.s32.totalorder %s26, 1
      %p82 = por %p80, %p81
      %p84 = scmp.ne.s32.totalorder %s69, %s83
      %p85 = scmp.eq.s32.totalorder %s26, 0
      %p86 = por %p84, %p85
      %s88 = sadd.s32 %s87, 1
      %p91 = scmp.eq.s32.totalorder %s20, 1
      %p92 = scmp.ne.s32.totalorder %s87, %s89
      %p93 = scmp.eq.s32.totalorder %s20, 0
      %p94 = por %p92, %p93
      %p95 = scmp.ne.s32.totalorder %s87, %s89
      %p96 = scmp.eq.s32.totalorder %s25, 1
      %p97 = por %p95, %p96
      %p98 = scmp.ne.s32.totalorder %s89, %s90
      %p99 = scmp.eq.s32.totalorder %s25, 0
      %p100 = por %p98, %p99
      %p101 = scmp.ne.s32.totalorder %s89, %s90
      %p102 = scmp.eq.s32.totalorder %s26, 1
      %p103 = por %p101, %p102
      %p105 = scmp.ne.s32.totalorder %s90, %s104
      %p106 = scmp.eq.s32.totalorder %s26, 0
      %p107 = por %p105, %p106
      %s109 = sadd.s32 %s108, 1
      %p112 = scmp.eq.s32.totalorder %s20, 1
      %p113 = scmp.ne.s32.totalorder %s108, %s110
      %p114 = scmp.eq.s32.totalorder %s20, 0
      %p115 = por %p113, %p114
      %p116 = scmp.ne.s32.totalorder %s108, %s110
      %p117 = scmp.eq.s32.totalorder %s25, 1
      %p118 = por %p116, %p117
      %p119 = scmp.ne.s32.totalorder %s110, %s111
      %p120 = scmp.eq.s32.totalorder %s25, 0
      %p121 = por %p119, %p120
      %p122 = scmp.ne.s32.totalorder %s110, %s111
      %p123 = scmp.eq.s32.totalorder %s26, 1
      %p124 = por %p122, %p123
      %p126 = scmp.ne.s32.totalorder %s111, %s125
      %p127 = scmp.eq.s32.totalorder %s26, 0
      %p128 = por %p126, %p127
      %s130 = sadd.s32 %s129, 1
      %p133 = scmp.eq.s32.totalorder %s20, 1
      %p134 = scmp.ne.s32.totalorder %s129, %s131
      %p135 = scmp.eq.s32.totalorder %s20, 0
      %p136 = por %p134, %p135
      %p137 = scmp.ne.s32.totalorder %s129, %s131
      %p138 = scmp.eq.s32.totalorder %s25, 1
      %p139 = por %p137, %p138
      %p140 = scmp.ne.s32.totalorder %s131, %s132
      %p141 = scmp.eq.s32.totalorder %s25, 0
      %p142 = por %p140, %p141
      %p143 = scmp.ne.s32.totalorder %s131, %s132
      %p144 = scmp.eq.s32.totalorder %s26, 1
      %p145 = por %p143, %p144
      %p147 = scmp.ne.s32.totalorder %s132, %s146
      %p148 = scmp.eq.s32.totalorder %s26, 0
      %p149 = por %p147, %p148
      %s151 = sadd.s32 %s150, 1
      %p154 = scmp.eq.s32.totalorder %s20, 1
      %p155 = scmp.ne.s32.totalorder %s150, %s152
      %p156 = scmp.eq.s32.totalorder %s20, 0
      %p157 = por %p155, %p156
      %p158 = scmp.ne.s32.totalorder %s150, %s152
      %p159 = scmp.eq.s32.totalorder %s25, 1
      %p160 = por %p158, %p159
      %p161 = scmp.ne.s32.totalorder %s152, %s153
      %p162 = scmp.eq.s32.totalorder %s25, 0
      %p163 = por %p161, %p162
      %p164 = scmp.ne.s32.totalorder %s152, %s153
      %p165 = scmp.eq.s32.totalorder %s26, 1
      %p166 = por %p164, %p165
      %p168 = scmp.ne.s32.totalorder %s153, %s167
      %p169 = scmp.eq.s32.totalorder %s26, 0
      %p170 = por %p168, %p169
      %s172 = sadd.s32 %s171, 1
      %p175 = scmp.eq.s32.totalorder %s20, 1
      %p176 = scmp.ne.s32.totalorder %s171, %s173
      %p177 = scmp.eq.s32.totalorder %s20, 0
      %p178 = por %p176, %p177
      %p179 = scmp.ne.s32.totalorder %s171, %s173
      %p180 = scmp.eq.s32.totalorder %s25, 1
      %p181 = por %p179, %p180
      %p182 = scmp.ne.s32.totalorder %s173, %s174
      %p183 = scmp.eq.s32.totalorder %s25, 0
      %p184 = por %p182, %p183
      %p185 = scmp.ne.s32.totalorder %s173, %s174
      %p186 = scmp.eq.s32.totalorder %s26, 1
      %p187 = por %p185, %p186
      %p189 = scmp.ne.s32.totalorder %s174, %s188
      %p190 = scmp.eq.s32.totalorder %s26, 0
      %p191 = por %p189, %p190
      %s192 = ssub.s32 %s27, %s39
      %p193 = scmp.eq.s32.totalorder %s192, 0
      %s195 = sadd.s32 %s194, 1
      %s196 = scalar_select %p193, %s194, %s195
      %p199 = pneg %p193
      %p200 = scmp.eq.s32.totalorder %s20, 1
      %p201 = por %p199, %p200
      %p202 = scmp.ne.s32.totalorder %s194, %s197
      %p203 = scmp.eq.s32.totalorder %s20, 0
      %p204 = por %p202, %p203
      %p205 = scmp.ne.s32.totalorder %s194, %s197
      %p206 = scmp.eq.s32.totalorder %s25, 1
      %p207 = por %p205, %p206
      %p208 = scmp.ne.s32.totalorder %s197, %s198
      %p209 = scmp.eq.s32.totalorder %s25, 0
      %p210 = por %p208, %p209
      %p211 = scmp.ne.s32.totalorder %s197, %s198
      %p212 = scmp.eq.s32.totalorder %s26, 1
      %p213 = por %p211, %p212
      %p215 = scmp.ne.s32.totalorder %s198, %s214
      %p216 = scmp.eq.s32.totalorder %s26, 0
      %p217 = por %p215, %p216
      %p218 = scmp.le.s32.totalorder 1, %s20
      %p219 = scmp.lt.s32.totalorder %s20, 3
      %p220 = pnand %p218, %p219
      %p221 = pneg %p220
      // Predicated region
      $region9: #{tpu_custom_call.1} parent=5 // pred_check
        _
      $region10: #{tpu_custom_call.1} parent=5 // pred_check_branch
        %223 = sbr.rel (%p220) target = $region12
      $region11: #{tpu_custom_call.1} parent=5 // pred_region
        %s224 = ssub.s32 %s20, 1
        // Predicated region
        $region13: #{tpu_custom_call.1} parent=11 // pred_check
          %p225 = pneg %p79
        $region14: #{tpu_custom_call.1} parent=11 // pred_check_branch
          %227 = sbr.rel (%p225) target = $region16
        $region15: #{tpu_custom_call.1} parent=11 // pred_region
          %s229 = ssub.s32 8192, 8192
          %230 = vsyncadd [#allocation7], %s229
          %s231 = sshll.u32 [#allocation6], 4
          %s232 = int_to_ptr.vmem [resolvable:$true] %s231
          %237 = dma.hbm_to_vmem [thread:$0]  %s1, 8192, %s232, [#allocation7], 256, 256, 16
        $region16: #{tpu_custom_call.1} parent=11 // pred_fallthru
          _
        // Predicated region
        $region17: #{tpu_custom_call.1} parent=11 // pred_check
          %p238 = pneg %p100
        $region18: #{tpu_custom_call.1} parent=11 // pred_check_branch
          %240 = sbr.rel (%p238) target = $region20
        $region19: #{tpu_custom_call.1} parent=11 // pred_region
          _
        $region20: #{tpu_custom_call.1} parent=11 // pred_fallthru
          _
        // Predicated region
        $region21: #{tpu_custom_call.1} parent=11 // pred_check
          %p241 = pneg %p121
        $region22: #{tpu_custom_call.1} parent=11 // pred_check_branch
          %243 = sbr.rel (%p241) target = $region24
        $region23: #{tpu_custom_call.1} parent=11 // pred_region
          %s245 = ssub.s32 8192, 8192
          %246 = vsyncadd [#allocation7], %s245
          %s247 = sshll.u32 [#allocation8], 4
          %s248 = int_to_ptr.vmem [resolvable:$true] %s247
          %253 = dma.hbm_to_vmem [thread:$0]  %s3, 8192, %s248, [#allocation7], 128, 128, 8
        $region24: #{tpu_custom_call.1} parent=11 // pred_fallthru
          _
        // Predicated region
        $region25: #{tpu_custom_call.1} parent=11 // pred_check
          %p254 = pneg %p142
        $region26: #{tpu_custom_call.1} parent=11 // pred_check_branch
          %256 = sbr.rel (%p254) target = $region28
        $region27: #{tpu_custom_call.1} parent=11 // pred_region
          _
        $region28: #{tpu_custom_call.1} parent=11 // pred_fallthru
          _
        // Predicated region
        $region29: #{tpu_custom_call.1} parent=11 // pred_check
          %p257 = pneg %p163
        $region30: #{tpu_custom_call.1} parent=11 // pred_check_branch
          %259 = sbr.rel (%p257) target = $region32
        $region31: #{tpu_custom_call.1} parent=11 // pred_region
          _
        $region32: #{tpu_custom_call.1} parent=11 // pred_fallthru
          _
        // Predicated region
        $region33: #{tpu_custom_call.1} parent=11 // pred_check
          %p260 = pneg %p184
        $region34: #{tpu_custom_call.1} parent=11 // pred_check_branch
          %262 = sbr.rel (%p260) target = $region36
        $region35: #{tpu_custom_call.1} parent=11 // pred_region
          _
        $region36: #{tpu_custom_call.1} parent=11 // pred_fallthru
          _
      $region12: #{tpu_custom_call.1} parent=5 // pred_fallthru
        _
      %p263 = scmp.lt.s32.totalorder %s20, 2
      // Predicated region
      $region37: #{tpu_custom_call.1} parent=5 // pred_check
        %p264 = pneg %p263
      $region38: #{tpu_custom_call.1} parent=5 // pred_check_branch
        %266 = sbr.rel (%p264) target = $region40
      $region39: #{tpu_custom_call.1} parent=5 // pred_region
        // Predicated region
        $region41: #{tpu_custom_call.1} parent=39 // pred_check
          %p267 = pneg %p52
        $region42: #{tpu_custom_call.1} parent=39 // pred_check_branch
          %269 = sbr.rel (%p267) target = $region44
        $region43: #{tpu_custom_call.1} parent=39 // pred_region
          %s270 = sand.u32 %s42, 1
          %s271 = scalar_lea.sflag [#allocation4], %s270
          %s272 = sand.u32 %s42, 1
          %s273 = smul.addr %s272, 16
          %s274 = scalar_lea.vmem [#allocation3], %s273
          %s276 = ssub.s32 256, 256
          %277 = vsyncadd %s271, %s276
          %s278 = smul.addr %s27, 2
          %s279 = smul.addr %s278, 128
          %s280 = scalar_lea.hbm %s0, %s279
          %s282 = sshll.u32 %s274, 4
          %s283 = int_to_ptr.vmem [resolvable:$true] %s282
          %285 = dma.hbm_to_vmem [thread:$0]  %s280, 256, %s283, %s271
        $region44: #{tpu_custom_call.1} parent=39 // pred_fallthru
          _
      $region40: #{tpu_custom_call.1} parent=5 // pred_fallthru
        _
      %p286 = scmp.le.s32.totalorder 1, %s20
      %p287 = scmp.lt.s32.totalorder %s20, 3
      %p288 = pnand %p286, %p287
      %p289 = pneg %p288
      // Predicated region
      $region45: #{tpu_custom_call.1} parent=5 // pred_check
        _
      $region46: #{tpu_custom_call.1} parent=5 // pred_check_branch
        %291 = sbr.rel (%p288) target = $region48
      $region47: #{tpu_custom_call.1} parent=5 // pred_region
        %s292 = ssub.s32 %s20, 1
        %s293 = sand.u32 %s45, 1
        %s294 = scalar_lea.sflag [#allocation4], %s293
        %s295 = sand.u32 %s45, 1
        %s296 = smul.addr %s295, 16
        %s297 = scalar_lea.vmem [#allocation3], %s296
        // Predicated region
        $region49: #{tpu_custom_call.1} parent=47 // pred_check
          %p298 = pneg %p58
        $region50: #{tpu_custom_call.1} parent=47 // pred_check_branch
          %300 = sbr.rel (%p298) target = $region52
        $region51: #{tpu_custom_call.1} parent=47 // pred_region
          %301 = dma.done %s294, 256
        $region52: #{tpu_custom_call.1} parent=47 // pred_fallthru
          _
        // Predicated region
        $region53: #{tpu_custom_call.1} parent=47 // pred_check
          %p302 = pneg %p79
        $region54: #{tpu_custom_call.1} parent=47 // pred_check_branch
          %304 = sbr.rel (%p302) target = $region56
        $region55: #{tpu_custom_call.1} parent=47 // pred_region
          %305 = dma.done [#allocation7], 8192
        $region56: #{tpu_custom_call.1} parent=47 // pred_fallthru
          _
        // Predicated region
        $region57: #{tpu_custom_call.1} parent=47 // pred_check
          %p306 = pneg %p121
        $region58: #{tpu_custom_call.1} parent=47 // pred_check_branch
          %308 = sbr.rel (%p306) target = $region60
        $region59: #{tpu_custom_call.1} parent=47 // pred_region
          %309 = dma.done [#allocation7], 8192
        $region60: #{tpu_custom_call.1} parent=47 // pred_fallthru
          _
        %s310 = sand.u32 %s45, 1
        %s311 = scalar_lea.sflag [#allocation4], %s310
        %s312 = sand.u32 %s45, 1
        %s313 = smul.addr %s312, 16
        %s314 = scalar_lea.vmem [#allocation3], %s313
        %p315 = pneg %p58
        %p316 = pneg %p55
        %p317 = pneg %p79
        %p318 = pneg %p76
        %p319 = pneg %p100
        %p320 = pneg %p97
        %p321 = pneg %p121
        %p322 = pneg %p118
        %p323 = pneg %p142
        %p324 = pneg %p139
        %p325 = pneg %p163
        %p326 = pneg %p160
        %p327 = pneg %p184
        %p328 = pneg %p181
        %p329 = pneg %p210
        %p330 = pneg %p207
        %s331 = sand.u32 %s197, 1
        %s332 = scalar_lea.sflag [#allocation5], %s331
        %s333 = sand.u32 %s197, 1
        %s334 = smul.addr %s333, 16
        %s335 = scalar_lea.vmem [#allocation9], %s334
        %p336 = scmp.eq.s32.totalorder %s30, 0
        // Predicated region
        $region61: #{tpu_custom_call.1} parent=47 // pred_check
          %p337 = pneg %p336
        $region62: #{tpu_custom_call.1} parent=47 // pred_check_branch
          %339 = sbr.rel (%p337) target = $region64
        $region63: #{tpu_custom_call.1} parent=47 // pred_region
          %340 = vst [vmem:[#allocation2] sm:$0xff] 0.0
          %341 = vst [vmem:[#allocation2 + $0x8] sm:$0xff] 0.0
        $region64: #{tpu_custom_call.1} parent=47 // pred_fallthru
          _
        %v342 = vld [vmem:[%s297] sm:$0xff]
        %v343 = vld [vmem:[%s297 + $0x8] sm:$0xff]
        %v344 = vpack.c.bf16 %v342, %v342
        %v345 = vpack.c.bf16 %v343, %v343
        %v346 = vld [vmem:[#allocation6] sm:$0xff]
        %v347 = vld [vmem:[#allocation6 + $0x8] sm:$0xff]
        %v348 = vld [vmem:[#allocation6 + $0x10] sm:$0xff]
        %v349 = vld [vmem:[#allocation6 + $0x18] sm:$0xff]
        %v350 = vld [vmem:[#allocation6 + $0x20] sm:$0xff]
        %v351 = vld [vmem:[#allocation6 + $0x28] sm:$0xff]
        %v352 = vld [vmem:[#allocation6 + $0x30] sm:$0xff]
        %v353 = vld [vmem:[#allocation6 + $0x38] sm:$0xff]
        %v354 = vld [vmem:[#allocation6 + $0x40] sm:$0xff]
        %v355 = vld [vmem:[#allocation6 + $0x48] sm:$0xff]
        %v356 = vld [vmem:[#allocation6 + $0x50] sm:$0xff]
        %v357 = vld [vmem:[#allocation6 + $0x58] sm:$0xff]
        %v358 = vld [vmem:[#allocation6 + $0x60] sm:$0xff]
        %v359 = vld [vmem:[#allocation6 + $0x68] sm:$0xff]
        %v360 = vld [vmem:[#allocation6 + $0x70] sm:$0xff]
        %v361 = vld [vmem:[#allocation6 + $0x78] sm:$0xff]
        %v362 = vld [vmem:[#allocation6 + $0x80] sm:$0xff]
        %v363 = vld [vmem:[#allocation6 + $0x88] sm:$0xff]
        %v364 = vld [vmem:[#allocation6 + $0x90] sm:$0xff]
        %v365 = vld [vmem:[#allocation6 + $0x98] sm:$0xff]
        %v366 = vld [vmem:[#allocation6 + $0xa0] sm:$0xff]
        %v367 = vld [vmem:[#allocation6 + $0xa8] sm:$0xff]
        %v368 = vld [vmem:[#allocation6 + $0xb0] sm:$0xff]
        %v369 = vld [vmem:[#allocation6 + $0xb8] sm:$0xff]
        %v370 = vld [vmem:[#allocation6 + $0xc0] sm:$0xff]
        %v371 = vld [vmem:[#allocation6 + $0xc8] sm:$0xff]
        %v372 = vld [vmem:[#allocation6 + $0xd0] sm:$0xff]
        %v373 = vld [vmem:[#allocation6 + $0xd8] sm:$0xff]
        %v374 = vld [vmem:[#allocation6 + $0xe0] sm:$0xff]
        %v375 = vld [vmem:[#allocation6 + $0xe8] sm:$0xff]
        %v376 = vld [vmem:[#allocation6 + $0xf0] sm:$0xff]
        %v377 = vld [vmem:[#allocation6 + $0xf8] sm:$0xff]
        %v378 = vld [vmem:[#allocation6 + $0x100] sm:$0xff]
        %v379 = vld [vmem:[#allocation6 + $0x108] sm:$0xff]
        %v380 = vld [vmem:[#allocation6 + $0x110] sm:$0xff]
        %v381 = vld [vmem:[#allocation6 + $0x118] sm:$0xff]
        %v382 = vld [vmem:[#allocation6 + $0x120] sm:$0xff]
        %v383 = vld [vmem:[#allocation6 + $0x128] sm:$0xff]
        %v384 = vld [vmem:[#allocation6 + $0x130] sm:$0xff]
        %v385 = vld [vmem:[#allocation6 + $0x138] sm:$0xff]
        %v386 = vld [vmem:[#allocation6 + $0x140] sm:$0xff]
        %v387 = vld [vmem:[#allocation6 + $0x148] sm:$0xff]
        %v388 = vld [vmem:[#allocation6 + $0x150] sm:$0xff]
        %v389 = vld [vmem:[#allocation6 + $0x158] sm:$0xff]
        %v390 = vld [vmem:[#allocation6 + $0x160] sm:$0xff]
        %v391 = vld [vmem:[#allocation6 + $0x168] sm:$0xff]
        %v392 = vld [vmem:[#allocation6 + $0x170] sm:$0xff]
        %v393 = vld [vmem:[#allocation6 + $0x178] sm:$0xff]
        %v394 = vld [vmem:[#allocation6 + $0x180] sm:$0xff]
        %v395 = vld [vmem:[#allocation6 + $0x188] sm:$0xff]
        %v396 = vld [vmem:[#allocation6 + $0x190] sm:$0xff]
        %v397 = vld [vmem:[#allocation6 + $0x198] sm:$0xff]
        %v398 = vld [vmem:[#allocation6 + $0x1a0] sm:$0xff]
        %v399 = vld [vmem:[#allocation6 + $0x1a8] sm:$0xff]
        %v400 = vld [vmem:[#allocation6 + $0x1b0] sm:$0xff]
        %v401 = vld [vmem:[#allocation6 + $0x1b8] sm:$0xff]
        %v402 = vld [vmem:[#allocation6 + $0x1c0] sm:$0xff]
        %v403 = vld [vmem:[#allocation6 + $0x1c8] sm:$0xff]
        %v404 = vld [vmem:[#allocation6 + $0x1d0] sm:$0xff]
        %v405 = vld [vmem:[#allocation6 + $0x1d8] sm:$0xff]
        %v406 = vld [vmem:[#allocation6 + $0x1e0] sm:$0xff]
        %v407 = vld [vmem:[#allocation6 + $0x1e8] sm:$0xff]
        %v408 = vld [vmem:[#allocation6 + $0x1f0] sm:$0xff]
        %v409 = vld [vmem:[#allocation6 + $0x1f8] sm:$0xff]
        %v410 = vld [vmem:[%s2] sm:$0xf]
        %v412 = vlaneseq
        %v413 = vshrl.u32 %v412, 7
        %v414 = vsub.s32 0, %v413
        %v415 = vrot.slane %v410, %v414
        %v416 = vlaneseq
        %v417 = vshrl.u32 %v416, 7
        %v418 = vsub.s32 1, %v417
        %v419 = vrot.slane %v410, %v418
        %v420 = vlaneseq
        %v421 = vshrl.u32 %v420, 7
        %v422 = vsub.s32 2, %v421
        %v423 = vrot.slane %v410, %v422
        %v424 = vlaneseq
        %v425 = vshrl.u32 %v424, 7
        %v426 = vsub.s32 3, %v425
        %v427 = vrot.slane %v410, %v426
        %v496 = vunpack.c.l.b16 %v346
        %v497 = vunpack.c.h.b16 %v346
        %v498 = vunpack.c.l.b16 %v347
        %v499 = vunpack.c.h.b16 %v347
        %v500 = vunpack.c.l.b16 %v348
        %v501 = vunpack.c.h.b16 %v348
        %v502 = vunpack.c.l.b16 %v349
        %v503 = vunpack.c.h.b16 %v349
        %v504 = vunpack.c.l.b16 %v350
        %v505 = vunpack.c.h.b16 %v350
        %v506 = vunpack.c.l.b16 %v351
        %v507 = vunpack.c.h.b16 %v351
        %v508 = vunpack.c.l.b16 %v352
        %v509 = vunpack.c.h.b16 %v352
        %v510 = vunpack.c.l.b16 %v353
        %v511 = vunpack.c.h.b16 %v353
        %v512 = vunpack.c.l.b16 %v354
        %v513 = vunpack.c.h.b16 %v354
        %v514 = vunpack.c.l.b16 %v355
        %v515 = vunpack.c.h.b16 %v355
        %v516 = vunpack.c.l.b16 %v356
        %v517 = vunpack.c.h.b16 %v356
        %v518 = vunpack.c.l.b16 %v357
        %v519 = vunpack.c.h.b16 %v357
        %v520 = vunpack.c.l.b16 %v358
        %v521 = vunpack.c.h.b16 %v358
        %v522 = vunpack.c.l.b16 %v359
        %v523 = vunpack.c.h.b16 %v359
        %v524 = vunpack.c.l.b16 %v360
        %v525 = vunpack.c.h.b16 %v360
        %v526 = vunpack.c.l.b16 %v361
        %v527 = vunpack.c.h.b16 %v361
        %v528 = vunpack.c.l.b16 %v362
        %v529 = vunpack.c.h.b16 %v362
        %v530 = vunpack.c.l.b16 %v363
        %v531 = vunpack.c.h.b16 %v363
        %v532 = vunpack.c.l.b16 %v364
        %v533 = vunpack.c.h.b16 %v364
        %v534 = vunpack.c.l.b16 %v365
        %v535 = vunpack.c.h.b16 %v365
        %v536 = vunpack.c.l.b16 %v366
        %v537 = vunpack.c.h.b16 %v366
        %v538 = vunpack.c.l.b16 %v367
        %v539 = vunpack.c.h.b16 %v367
        %v540 = vunpack.c.l.b16 %v368
        %v541 = vunpack.c.h.b16 %v368
        %v542 = vunpack.c.l.b16 %v369
        %v543 = vunpack.c.h.b16 %v369
        %v544 = vunpack.c.l.b16 %v370
        %v545 = vunpack.c.h.b16 %v370
        %v546 = vunpack.c.l.b16 %v371
        %v547 = vunpack.c.h.b16 %v371
        %v548 = vunpack.c.l.b16 %v372
        %v549 = vunpack.c.h.b16 %v372
        %v550 = vunpack.c.l.b16 %v373
        %v551 = vunpack.c.h.b16 %v373
        %v552 = vunpack.c.l.b16 %v374
        %v553 = vunpack.c.h.b16 %v374
        %v554 = vunpack.c.l.b16 %v375
        %v555 = vunpack.c.h.b16 %v375
        %v556 = vunpack.c.l.b16 %v376
        %v557 = vunpack.c.h.b16 %v376
        %v558 = vunpack.c.l.b16 %v377
        %v559 = vunpack.c.h.b16 %v377
        %v560 = vunpack.c.l.b16 %v378
        %v561 = vunpack.c.h.b16 %v378
        %v562 = vunpack.c.l.b16 %v379
        %v563 = vunpack.c.h.b16 %v379
        %v564 = vunpack.c.l.b16 %v380
        %v565 = vunpack.c.h.b16 %v380
        %v566 = vunpack.c.l.b16 %v381
        %v567 = vunpack.c.h.b16 %v381
        %v568 = vunpack.c.l.b16 %v382
        %v569 = vunpack.c.h.b16 %v382
        %v570 = vunpack.c.l.b16 %v383
        %v571 = vunpack.c.h.b16 %v383
        %v572 = vunpack.c.l.b16 %v384
        %v573 = vunpack.c.h.b16 %v384
        %v574 = vunpack.c.l.b16 %v385
        %v575 = vunpack.c.h.b16 %v385
        %v576 = vunpack.c.l.b16 %v386
        %v577 = vunpack.c.h.b16 %v386
        %v578 = vunpack.c.l.b16 %v387
        %v579 = vunpack.c.h.b16 %v387
        %v580 = vunpack.c.l.b16 %v388
        %v581 = vunpack.c.h.b16 %v388
        %v582 = vunpack.c.l.b16 %v389
        %v583 = vunpack.c.h.b16 %v389
        %v584 = vunpack.c.l.b16 %v390
        %v585 = vunpack.c.h.b16 %v390
        %v586 = vunpack.c.l.b16 %v391
        %v587 = vunpack.c.h.b16 %v391
        %v588 = vunpack.c.l.b16 %v392
        %v589 = vunpack.c.h.b16 %v392
        %v590 = vunpack.c.l.b16 %v393
        %v591 = vunpack.c.h.b16 %v393
        %v592 = vunpack.c.l.b16 %v394
        %v593 = vunpack.c.h.b16 %v394
        %v594 = vunpack.c.l.b16 %v395
        %v595 = vunpack.c.h.b16 %v395
        %v596 = vunpack.c.l.b16 %v396
        %v597 = vunpack.c.h.b16 %v396
        %v598 = vunpack.c.l.b16 %v397
        %v599 = vunpack.c.h.b16 %v397
        %v600 = vunpack.c.l.b16 %v398
        %v601 = vunpack.c.h.b16 %v398
        %v602 = vunpack.c.l.b16 %v399
        %v603 = vunpack.c.h.b16 %v399
        %v604 = vunpack.c.l.b16 %v400
        %v605 = vunpack.c.h.b16 %v400
        %v606 = vunpack.c.l.b16 %v401
        %v607 = vunpack.c.h.b16 %v401
        %v608 = vunpack.c.l.b16 %v402
        %v609 = vunpack.c.h.b16 %v402
        %v610 = vunpack.c.l.b16 %v403
        %v611 = vunpack.c.h.b16 %v403
        %v612 = vunpack.c.l.b16 %v404
        %v613 = vunpack.c.h.b16 %v404
        %v614 = vunpack.c.l.b16 %v405
        %v615 = vunpack.c.h.b16 %v405
        %v616 = vunpack.c.l.b16 %v406
        %v617 = vunpack.c.h.b16 %v406
        %v618 = vunpack.c.l.b16 %v407
        %v619 = vunpack.c.h.b16 %v407
        %v620 = vunpack.c.l.b16 %v408
        %v621 = vunpack.c.h.b16 %v408
        %v622 = vunpack.c.l.b16 %v409
        %v623 = vunpack.c.h.b16 %v409
        %v624 = vpack.c.b16 %v500, %v496
        %v625 = vpack.c.b16 %v501, %v497
        %v626 = vpack.c.b16 %v502, %v498
        %v627 = vpack.c.b16 %v503, %v499
        %v628 = vpack.c.b16 %v508, %v504
        %v629 = vpack.c.b16 %v509, %v505
        %v630 = vpack.c.b16 %v510, %v506
        %v631 = vpack.c.b16 %v511, %v507
        %v632 = vpack.c.b16 %v516, %v512
        %v633 = vpack.c.b16 %v517, %v513
        %v634 = vpack.c.b16 %v518, %v514
        %v635 = vpack.c.b16 %v519, %v515
        %v636 = vpack.c.b16 %v524, %v520
        %v637 = vpack.c.b16 %v525, %v521
        %v638 = vpack.c.b16 %v526, %v522
        %v639 = vpack.c.b16 %v527, %v523
        %v640 = vpack.c.b16 %v532, %v528
        %v641 = vpack.c.b16 %v533, %v529
        %v642 = vpack.c.b16 %v534, %v530
        %v643 = vpack.c.b16 %v535, %v531
        %v644 = vpack.c.b16 %v540, %v536
        %v645 = vpack.c.b16 %v541, %v537
        %v646 = vpack.c.b16 %v542, %v538
        %v647 = vpack.c.b16 %v543, %v539
        %v648 = vpack.c.b16 %v548, %v544
        %v649 = vpack.c.b16 %v549, %v545
        %v650 = vpack.c.b16 %v550, %v546
        %v651 = vpack.c.b16 %v551, %v547
        %v652 = vpack.c.b16 %v556, %v552
        %v653 = vpack.c.b16 %v557, %v553
        %v654 = vpack.c.b16 %v558, %v554
        %v655 = vpack.c.b16 %v559, %v555
        %v656 = vpack.c.b16 %v564, %v560
        %v657 = vpack.c.b16 %v565, %v561
        %v658 = vpack.c.b16 %v566, %v562
        %v659 = vpack.c.b16 %v567, %v563
        %v660 = vpack.c.b16 %v572, %v568
        %v661 = vpack.c.b16 %v573, %v569
        %v662 = vpack.c.b16 %v574, %v570
        %v663 = vpack.c.b16 %v575, %v571
        %v664 = vpack.c.b16 %v580, %v576
        %v665 = vpack.c.b16 %v581, %v577
        %v666 = vpack.c.b16 %v582, %v578
        %v667 = vpack.c.b16 %v583, %v579
        %v668 = vpack.c.b16 %v588, %v584
        %v669 = vpack.c.b16 %v589, %v585
        %v670 = vpack.c.b16 %v590, %v586
        %v671 = vpack.c.b16 %v591, %v587
        %v672 = vpack.c.b16 %v596, %v592
        %v673 = vpack.c.b16 %v597, %v593
        %v674 = vpack.c.b16 %v598, %v594
        %v675 = vpack.c.b16 %v599, %v595
        %v676 = vpack.c.b16 %v604, %v600
        %v677 = vpack.c.b16 %v605, %v601
        %v678 = vpack.c.b16 %v606, %v602
        %v679 = vpack.c.b16 %v607, %v603
        %v680 = vpack.c.b16 %v612, %v608
        %v681 = vpack.c.b16 %v613, %v609
        %v682 = vpack.c.b16 %v614, %v610
        %v683 = vpack.c.b16 %v615, %v611
        %v684 = vpack.c.b16 %v620, %v616
        %v685 = vpack.c.b16 %v621, %v617
        %v686 = vpack.c.b16 %v622, %v618
        %v687 = vpack.c.b16 %v623, %v619
        %752 = vmatprep.subr.bf16.mxu0 %v625
        %753 = vmatpush1.bf16.msra.mxu0 %v624
        %754 = vmatprep.subr.bf16.mxu0 %v629
        %755 = vmatpush1.bf16.msra.mxu0 %v628
        %756 = vmatprep.subr.bf16.mxu0 %v633
        %757 = vmatpush1.bf16.msra.mxu0 %v632
        %758 = vmatprep.subr.bf16.mxu0 %v637
        %759 = vmatpush1.bf16.msra.mxu0 %v636
        %760 = vmatprep.subr.bf16.mxu0 %v641
        %761 = vmatpush1.bf16.msra.mxu0 %v640
        %762 = vmatprep.subr.bf16.mxu0 %v645
        %763 = vmatpush1.bf16.msra.mxu0 %v644
        %764 = vmatprep.subr.bf16.mxu0 %v649
        %765 = vmatpush1.bf16.msra.mxu0 %v648
        %766 = vmatprep.subr.bf16.mxu0 %v653
        %767 = vmatpush1.bf16.msra.mxu0 %v652
        %768 = vmatprep.subr.bf16.mxu0 %v657
        %769 = vmatpush1.bf16.msra.mxu0 %v656
        %770 = vmatprep.subr.bf16.mxu0 %v661
        %771 = vmatpush1.bf16.msra.mxu0 %v660
        %772 = vmatprep.subr.bf16.mxu0 %v665
        %773 = vmatpush1.bf16.msra.mxu0 %v664
        %774 = vmatprep.subr.bf16.mxu0 %v669
        %775 = vmatpush1.bf16.msra.mxu0 %v668
        %776 = vmatprep.subr.bf16.mxu0 %v673
        %777 = vmatpush1.bf16.msra.mxu0 %v672
        %778 = vmatprep.subr.bf16.mxu0 %v677
        %779 = vmatpush1.bf16.msra.mxu0 %v676
        %780 = vmatprep.subr.bf16.mxu0 %v681
        %781 = vmatpush1.bf16.msra.mxu0 %v680
        %782 = vmatprep.subr.bf16.mxu0 %v685
        %783 = vmatpush1.bf16.msra.mxu0 %v684
        %784 = vmatprep.mubr.bf16.mxu0 %v345
        %785 = vmatmul.mubr.bf16.gmra.mrb[0].mxu0 %v344
        %v786 = vpop.f32.mrb[0].mxu0
        %v787 = vadd.f32 %v415, %v786
        %v788 = vpop.f32.mrb[0].mxu0
        %v789 = vadd.f32 %v419, %v788
        %v790 = vpop.f32.mrb[0].mxu0
        %v791 = vpop.f32.mrb[0].mxu0
        %792 = vdwg.mxu0
        %793 = vmatprep.subr.bf16.mxu0 %v627
        %794 = vmatpush1.bf16.msra.mxu0 %v626
        %795 = vmatprep.subr.bf16.mxu0 %v631
        %796 = vmatpush1.bf16.msra.mxu0 %v630
        %797 = vmatprep.subr.bf16.mxu0 %v635
        %798 = vmatpush1.bf16.msra.mxu0 %v634
        %799 = vmatprep.subr.bf16.mxu0 %v639
        %800 = vmatpush1.bf16.msra.mxu0 %v638
        %801 = vmatprep.subr.bf16.mxu0 %v643
        %802 = vmatpush1.bf16.msra.mxu0 %v642
        %803 = vmatprep.subr.bf16.mxu0 %v647
        %804 = vmatpush1.bf16.msra.mxu0 %v646
        %805 = vmatprep.subr.bf16.mxu0 %v651
        %806 = vmatpush1.bf16.msra.mxu0 %v650
        %807 = vmatprep.subr.bf16.mxu0 %v655
        %808 = vmatpush1.bf16.msra.mxu0 %v654
        %809 = vmatprep.subr.bf16.mxu0 %v659
        %810 = vmatpush1.bf16.msra.mxu0 %v658
        %811 = vmatprep.subr.bf16.mxu0 %v663
        %812 = vmatpush1.bf16.msra.mxu0 %v662
        %813 = vmatprep.subr.bf16.mxu0 %v667
        %814 = vmatpush1.bf16.msra.mxu0 %v666
        %815 = vmatprep.subr.bf16.mxu0 %v671
        %816 = vmatpush1.bf16.msra.mxu0 %v670
        %817 = vmatprep.subr.bf16.mxu0 %v675
        %818 = vmatpush1.bf16.msra.mxu0 %v674
        %819 = vmatprep.subr.bf16.mxu0 %v679
        %820 = vmatpush1.bf16.msra.mxu0 %v678
        %821 = vmatprep.subr.bf16.mxu0 %v683
        %822 = vmatpush1.bf16.msra.mxu0 %v682
        %823 = vmatprep.subr.bf16.mxu0 %v687
        %824 = vmatpush1.bf16.msra.mxu0 %v686
        %825 = vmatprep.mubr.bf16.mxu0 %v345
        %826 = vmatmul.mubr.bf16.gmra.mrb[0].mxu0 %v344
        %v827 = vpop.f32.mrb[0].mxu0
        %v828 = vadd.f32 %v423, %v827
        %v829 = vpop.f32.mrb[0].mxu0
        %v830 = vadd.f32 %v427, %v829
        %v831 = vpop.f32.mrb[0].mxu0
        %v832 = vpop.f32.mrb[0].mxu0
        %833 = vdwg.mxu0
        %v834 = vmax.f32 %v787, 0.0
        %v835 = vmax.f32 %v789, 0.0
        %v836 = vmax.f32 %v828, 0.0
        %v837 = vmax.f32 %v830, 0.0
        %v838 = vld [vmem:[#allocation2] sm:$0xff]
        %v839 = vld [vmem:[#allocation2 + $0x8] sm:$0xff]
        %v840 = vpack.c.bf16 %v834, %v834
        %v841 = vpack.c.bf16 %v835, %v835
        %v842 = vpack.c.bf16 %v836, %v836
        %v843 = vpack.c.bf16 %v837, %v837
        %v844 = vld [vmem:[#allocation8] sm:$0xff]
        %v845 = vld [vmem:[#allocation8 + $0x8] sm:$0xff]
        %v846 = vld [vmem:[#allocation8 + $0x10] sm:$0xff]
        %v847 = vld [vmem:[#allocation8 + $0x18] sm:$0xff]
        %v848 = vld [vmem:[#allocation8 + $0x20] sm:$0xff]
        %v849 = vld [vmem:[#allocation8 + $0x28] sm:$0xff]
        %v850 = vld [vmem:[#allocation8 + $0x30] sm:$0xff]
        %v851 = vld [vmem:[#allocation8 + $0x38] sm:$0xff]
        %v852 = vld [vmem:[#allocation8 + $0x40] sm:$0xff]
        %v853 = vld [vmem:[#allocation8 + $0x48] sm:$0xff]
        %v854 = vld [vmem:[#allocation8 + $0x50] sm:$0xff]
        %v855 = vld [vmem:[#allocation8 + $0x58] sm:$0xff]
        %v856 = vld [vmem:[#allocation8 + $0x60] sm:$0xff]
        %v857 = vld [vmem:[#allocation8 + $0x68] sm:$0xff]
        %v858 = vld [vmem:[#allocation8 + $0x70] sm:$0xff]
        %v859 = vld [vmem:[#allocation8 + $0x78] sm:$0xff]
        %v860 = vld [vmem:[#allocation8 + $0x80] sm:$0xff]
        %v861 = vld [vmem:[#allocation8 + $0x88] sm:$0xff]
        %v862 = vld [vmem:[#allocation8 + $0x90] sm:$0xff]
        %v863 = vld [vmem:[#allocation8 + $0x98] sm:$0xff]
        %v864 = vld [vmem:[#allocation8 + $0xa0] sm:$0xff]
        %v865 = vld [vmem:[#allocation8 + $0xa8] sm:$0xff]
        %v866 = vld [vmem:[#allocation8 + $0xb0] sm:$0xff]
        %v867 = vld [vmem:[#allocation8 + $0xb8] sm:$0xff]
        %v868 = vld [vmem:[#allocation8 + $0xc0] sm:$0xff]
        %v869 = vld [vmem:[#allocation8 + $0xc8] sm:$0xff]
        %v870 = vld [vmem:[#allocation8 + $0xd0] sm:$0xff]
        %v871 = vld [vmem:[#allocation8 + $0xd8] sm:$0xff]
        %v872 = vld [vmem:[#allocation8 + $0xe0] sm:$0xff]
        %v873 = vld [vmem:[#allocation8 + $0xe8] sm:$0xff]
        %v874 = vld [vmem:[#allocation8 + $0xf0] sm:$0xff]
        %v875 = vld [vmem:[#allocation8 + $0xf8] sm:$0xff]
        %v876 = vld [vmem:[#allocation8 + $0x100] sm:$0xff]
        %v877 = vld [vmem:[#allocation8 + $0x108] sm:$0xff]
        %v878 = vld [vmem:[#allocation8 + $0x110] sm:$0xff]
        %v879 = vld [vmem:[#allocation8 + $0x118] sm:$0xff]
        %v880 = vld [vmem:[#allocation8 + $0x120] sm:$0xff]
        %v881 = vld [vmem:[#allocation8 + $0x128] sm:$0xff]
        %v882 = vld [vmem:[#allocation8 + $0x130] sm:$0xff]
        %v883 = vld [vmem:[#allocation8 + $0x138] sm:$0xff]
        %v884 = vld [vmem:[#allocation8 + $0x140] sm:$0xff]
        %v885 = vld [vmem:[#allocation8 + $0x148] sm:$0xff]
        %v886 = vld [vmem:[#allocation8 + $0x150] sm:$0xff]
        %v887 = vld [vmem:[#allocation8 + $0x158] sm:$0xff]
        %v888 = vld [vmem:[#allocation8 + $0x160] sm:$0xff]
        %v889 = vld [vmem:[#allocation8 + $0x168] sm:$0xff]
        %v890 = vld [vmem:[#allocation8 + $0x170] sm:$0xff]
        %v891 = vld [vmem:[#allocation8 + $0x178] sm:$0xff]
        %v892 = vld [vmem:[#allocation8 + $0x180] sm:$0xff]
        %v893 = vld [vmem:[#allocation8 + $0x188] sm:$0xff]
        %v894 = vld [vmem:[#allocation8 + $0x190] sm:$0xff]
        %v895 = vld [vmem:[#allocation8 + $0x198] sm:$0xff]
        %v896 = vld [vmem:[#allocation8 + $0x1a0] sm:$0xff]
        %v897 = vld [vmem:[#allocation8 + $0x1a8] sm:$0xff]
        %v898 = vld [vmem:[#allocation8 + $0x1b0] sm:$0xff]
        %v899 = vld [vmem:[#allocation8 + $0x1b8] sm:$0xff]
        %v900 = vld [vmem:[#allocation8 + $0x1c0] sm:$0xff]
        %v901 = vld [vmem:[#allocation8 + $0x1c8] sm:$0xff]
        %v902 = vld [vmem:[#allocation8 + $0x1d0] sm:$0xff]
        %v903 = vld [vmem:[#allocation8 + $0x1d8] sm:$0xff]
        %v904 = vld [vmem:[#allocation8 + $0x1e0] sm:$0xff]
        %v905 = vld [vmem:[#allocation8 + $0x1e8] sm:$0xff]
        %v906 = vld [vmem:[#allocation8 + $0x1f0] sm:$0xff]
        %v907 = vld [vmem:[#allocation8 + $0x1f8] sm:$0xff]
        %v972 = vunpack.c.l.b16 %v844
        %v973 = vunpack.c.h.b16 %v844
        %v974 = vunpack.c.l.b16 %v845
        %v975 = vunpack.c.h.b16 %v845
        %v976 = vunpack.c.l.b16 %v846
        %v977 = vunpack.c.h.b16 %v846
        %v978 = vunpack.c.l.b16 %v847
        %v979 = vunpack.c.h.b16 %v847
        %v980 = vunpack.c.l.b16 %v848
        %v981 = vunpack.c.h.b16 %v848
        %v982 = vunpack.c.l.b16 %v849
        %v983 = vunpack.c.h.b16 %v849
        %v984 = vunpack.c.l.b16 %v850
        %v985 = vunpack.c.h.b16 %v850
        %v986 = vunpack.c.l.b16 %v851
        %v987 = vunpack.c.h.b16 %v851
        %v988 = vunpack.c.l.b16 %v852
        %v989 = vunpack.c.h.b16 %v852
        %v990 = vunpack.c.l.b16 %v853
        %v991 = vunpack.c.h.b16 %v853
        %v992 = vunpack.c.l.b16 %v854
        %v993 = vunpack.c.h.b16 %v854
        %v994 = vunpack.c.l.b16 %v855
        %v995 = vunpack.c.h.b16 %v855
        %v996 = vunpack.c.l.b16 %v856
        %v997 = vunpack.c.h.b16 %v856
        %v998 = vunpack.c.l.b16 %v857
        %v999 = vunpack.c.h.b16 %v857
        %v1000 = vunpack.c.l.b16 %v858
        %v1001 = vunpack.c.h.b16 %v858
        %v1002 = vunpack.c.l.b16 %v859
        %v1003 = vunpack.c.h.b16 %v859
        %v1004 = vunpack.c.l.b16 %v860
        %v1005 = vunpack.c.h.b16 %v860
        %v1006 = vunpack.c.l.b16 %v861
        %v1007 = vunpack.c.h.b16 %v861
        %v1008 = vunpack.c.l.b16 %v862
        %v1009 = vunpack.c.h.b16 %v862
        %v1010 = vunpack.c.l.b16 %v863
        %v1011 = vunpack.c.h.b16 %v863
        %v1012 = vunpack.c.l.b16 %v864
        %v1013 = vunpack.c.h.b16 %v864
        %v1014 = vunpack.c.l.b16 %v865
        %v1015 = vunpack.c.h.b16 %v865
        %v1016 = vunpack.c.l.b16 %v866
        %v1017 = vunpack.c.h.b16 %v866
        %v1018 = vunpack.c.l.b16 %v867
        %v1019 = vunpack.c.h.b16 %v867
        %v1020 = vunpack.c.l.b16 %v868
        %v1021 = vunpack.c.h.b16 %v868
        %v1022 = vunpack.c.l.b16 %v869
        %v1023 = vunpack.c.h.b16 %v869
        %v1024 = vunpack.c.l.b16 %v870
        %v1025 = vunpack.c.h.b16 %v870
        %v1026 = vunpack.c.l.b16 %v871
        %v1027 = vunpack.c.h.b16 %v871
        %v1028 = vunpack.c.l.b16 %v872
        %v1029 = vunpack.c.h.b16 %v872
        %v1030 = vunpack.c.l.b16 %v873
        %v1031 = vunpack.c.h.b16 %v873
        %v1032 = vunpack.c.l.b16 %v874
        %v1033 = vunpack.c.h.b16 %v874
        %v1034 = vunpack.c.l.b16 %v875
        %v1035 = vunpack.c.h.b16 %v875
        %v1036 = vunpack.c.l.b16 %v876
        %v1037 = vunpack.c.h.b16 %v876
        %v1038 = vunpack.c.l.b16 %v877
        %v1039 = vunpack.c.h.b16 %v877
        %v1040 = vunpack.c.l.b16 %v878
        %v1041 = vunpack.c.h.b16 %v878
        %v1042 = vunpack.c.l.b16 %v879
        %v1043 = vunpack.c.h.b16 %v879
        %v1044 = vunpack.c.l.b16 %v880
        %v1045 = vunpack.c.h.b16 %v880
        %v1046 = vunpack.c.l.b16 %v881
        %v1047 = vunpack.c.h.b16 %v881
        %v1048 = vunpack.c.l.b16 %v882
        %v1049 = vunpack.c.h.b16 %v882
        %v1050 = vunpack.c.l.b16 %v883
        %v1051 = vunpack.c.h.b16 %v883
        %v1052 = vunpack.c.l.b16 %v884
        %v1053 = vunpack.c.h.b16 %v884
        %v1054 = vunpack.c.l.b16 %v885
        %v1055 = vunpack.c.h.b16 %v885
        %v1056 = vunpack.c.l.b16 %v886
        %v1057 = vunpack.c.h.b16 %v886
        %v1058 = vunpack.c.l.b16 %v887
        %v1059 = vunpack.c.h.b16 %v887
        %v1060 = vunpack.c.l.b16 %v888
        %v1061 = vunpack.c.h.b16 %v888
        %v1062 = vunpack.c.l.b16 %v889
        %v1063 = vunpack.c.h.b16 %v889
        %v1064 = vunpack.c.l.b16 %v890
        %v1065 = vunpack.c.h.b16 %v890
        %v1066 = vunpack.c.l.b16 %v891
        %v1067 = vunpack.c.h.b16 %v891
        %v1068 = vunpack.c.l.b16 %v892
        %v1069 = vunpack.c.h.b16 %v892
        %v1070 = vunpack.c.l.b16 %v893
        %v1071 = vunpack.c.h.b16 %v893
        %v1072 = vunpack.c.l.b16 %v894
        %v1073 = vunpack.c.h.b16 %v894
        %v1074 = vunpack.c.l.b16 %v895
        %v1075 = vunpack.c.h.b16 %v895
        %v1076 = vunpack.c.l.b16 %v896
        %v1077 = vunpack.c.h.b16 %v896
        %v1078 = vunpack.c.l.b16 %v897
        %v1079 = vunpack.c.h.b16 %v897
        %v1080 = vunpack.c.l.b16 %v898
        %v1081 = vunpack.c.h.b16 %v898
        %v1082 = vunpack.c.l.b16 %v899
        %v1083 = vunpack.c.h.b16 %v899
        %v1084 = vunpack.c.l.b16 %v900
        %v1085 = vunpack.c.h.b16 %v900
        %v1086 = vunpack.c.l.b16 %v901
        %v1087 = vunpack.c.h.b16 %v901
        %v1088 = vunpack.c.l.b16 %v902
        %v1089 = vunpack.c.h.b16 %v902
        %v1090 = vunpack.c.l.b16 %v903
        %v1091 = vunpack.c.h.b16 %v903
        %v1092 = vunpack.c.l.b16 %v904
        %v1093 = vunpack.c.h.b16 %v904
        %v1094 = vunpack.c.l.b16 %v905
        %v1095 = vunpack.c.h.b16 %v905
        %v1096 = vunpack.c.l.b16 %v906
        %v1097 = vunpack.c.h.b16 %v906
        %v1098 = vunpack.c.l.b16 %v907
        %v1099 = vunpack.c.h.b16 %v907
        %v1100 = vpack.c.b16 %v974, %v972
        %v1101 = vpack.c.b16 %v975, %v973
        %v1102 = vpack.c.b16 %v978, %v976
        %v1103 = vpack.c.b16 %v979, %v977
        %v1104 = vpack.c.b16 %v982, %v980
        %v1105 = vpack.c.b16 %v983, %v981
        %v1106 = vpack.c.b16 %v986, %v984
        %v1107 = vpack.c.b16 %v987, %v985
        %v1108 = vpack.c.b16 %v990, %v988
        %v1109 = vpack.c.b16 %v991, %v989
        %v1110 = vpack.c.b16 %v994, %v992
        %v1111 = vpack.c.b16 %v995, %v993
        %v1112 = vpack.c.b16 %v998, %v996
        %v1113 = vpack.c.b16 %v999, %v997
        %v1114 = vpack.c.b16 %v1002, %v1000
        %v1115 = vpack.c.b16 %v1003, %v1001
        %v1116 = vpack.c.b16 %v1006, %v1004
        %v1117 = vpack.c.b16 %v1007, %v1005
        %v1118 = vpack.c.b16 %v1010, %v1008
        %v1119 = vpack.c.b16 %v1011, %v1009
        %v1120 = vpack.c.b16 %v1014, %v1012
        %v1121 = vpack.c.b16 %v1015, %v1013
        %v1122 = vpack.c.b16 %v1018, %v1016
        %v1123 = vpack.c.b16 %v1019, %v1017
        %v1124 = vpack.c.b16 %v1022, %v1020
        %v1125 = vpack.c.b16 %v1023, %v1021
        %v1126 = vpack.c.b16 %v1026, %v1024
        %v1127 = vpack.c.b16 %v1027, %v1025
        %v1128 = vpack.c.b16 %v1030, %v1028
        %v1129 = vpack.c.b16 %v1031, %v1029
        %v1130 = vpack.c.b16 %v1034, %v1032
        %v1131 = vpack.c.b16 %v1035, %v1033
        %v1132 = vpack.c.b16 %v1038, %v1036
        %v1133 = vpack.c.b16 %v1039, %v1037
        %v1134 = vpack.c.b16 %v1042, %v1040
        %v1135 = vpack.c.b16 %v1043, %v1041
        %v1136 = vpack.c.b16 %v1046, %v1044
        %v1137 = vpack.c.b16 %v1047, %v1045
        %v1138 = vpack.c.b16 %v1050, %v1048
        %v1139 = vpack.c.b16 %v1051, %v1049
        %v1140 = vpack.c.b16 %v1054, %v1052
        %v1141 = vpack.c.b16 %v1055, %v1053
        %v1142 = vpack.c.b16 %v1058, %v1056
        %v1143 = vpack.c.b16 %v1059, %v1057
        %v1144 = vpack.c.b16 %v1062, %v1060
        %v1145 = vpack.c.b16 %v1063, %v1061
        %v1146 = vpack.c.b16 %v1066, %v1064
        %v1147 = vpack.c.b16 %v1067, %v1065
        %v1148 = vpack.c.b16 %v1070, %v1068
        %v1149 = vpack.c.b16 %v1071, %v1069
        %v1150 = vpack.c.b16 %v1074, %v1072
        %v1151 = vpack.c.b16 %v1075, %v1073
        %v1152 = vpack.c.b16 %v1078, %v1076
        %v1153 = vpack.c.b16 %v1079, %v1077
        %v1154 = vpack.c.b16 %v1082, %v1080
        %v1155 = vpack.c.b16 %v1083, %v1081
        %v1156 = vpack.c.b16 %v1086, %v1084
        %v1157 = vpack.c.b16 %v1087, %v1085
        %v1158 = vpack.c.b16 %v1090, %v1088
        %v1159 = vpack.c.b16 %v1091, %v1089
        %v1160 = vpack.c.b16 %v1094, %v1092
        %v1161 = vpack.c.b16 %v1095, %v1093
        %v1162 = vpack.c.b16 %v1098, %v1096
        %v1163 = vpack.c.b16 %v1099, %v1097
        %1228 = vmatprep.subr.bf16.mxu0 %v1101
        %1229 = vmatpush1.bf16.msra.mxu0 %v1100
        %1230 = vmatprep.subr.bf16.mxu0 %v1103
        %1231 = vmatpush1.bf16.msra.mxu0 %v1102
        %1232 = vmatprep.subr.bf16.mxu0 %v1105
        %1233 = vmatpush1.bf16.msra.mxu0 %v1104
        %1234 = vmatprep.subr.bf16.mxu0 %v1107
        %1235 = vmatpush1.bf16.msra.mxu0 %v1106
        %1236 = vmatprep.subr.bf16.mxu0 %v1109
        %1237 = vmatpush1.bf16.msra.mxu0 %v1108
        %1238 = vmatprep.subr.bf16.mxu0 %v1111
        %1239 = vmatpush1.bf16.msra.mxu0 %v1110
        %1240 = vmatprep.subr.bf16.mxu0 %v1113
        %1241 = vmatpush1.bf16.msra.mxu0 %v1112
        %1242 = vmatprep.subr.bf16.mxu0 %v1115
        %1243 = vmatpush1.bf16.msra.mxu0 %v1114
        %1244 = vmatprep.subr.bf16.mxu0 %v1117
        %1245 = vmatpush1.bf16.msra.mxu0 %v1116
        %1246 = vmatprep.subr.bf16.mxu0 %v1119
        %1247 = vmatpush1.bf16.msra.mxu0 %v1118
        %1248 = vmatprep.subr.bf16.mxu0 %v1121
        %1249 = vmatpush1.bf16.msra.mxu0 %v1120
        %1250 = vmatprep.subr.bf16.mxu0 %v1123
        %1251 = vmatpush1.bf16.msra.mxu0 %v1122
        %1252 = vmatprep.subr.bf16.mxu0 %v1125
        %1253 = vmatpush1.bf16.msra.mxu0 %v1124
        %1254 = vmatprep.subr.bf16.mxu0 %v1127
        %1255 = vmatpush1.bf16.msra.mxu0 %v1126
        %1256 = vmatprep.subr.bf16.mxu0 %v1129
        %1257 = vmatpush1.bf16.msra.mxu0 %v1128
        %1258 = vmatprep.subr.bf16.mxu0 %v1131
        %1259 = vmatpush1.bf16.msra.mxu0 %v1130
        %1260 = vmatprep.mubr.bf16.mxu0 %v841
        %1261 = vmatmul.mubr.bf16.gmra.mrb[0].mxu0 %v840
        %v1262 = vpop.f32.mrb[0].mxu0
        %v1263 = vadd.f32 0.0, %v1262
        %v1264 = vpop.f32.mrb[0].mxu0
        %v1265 = vadd.f32 0.0, %v1264
        %v1266 = vpop.f32.mrb[0].mxu0
        %v1267 = vpop.f32.mrb[0].mxu0
        %1268 = vdwg.mxu0
        %1269 = vmatprep.subr.bf16.mxu0 %v1133
        %1270 = vmatpush1.bf16.msra.mxu0 %v1132
        %1271 = vmatprep.subr.bf16.mxu0 %v1135
        %1272 = vmatpush1.bf16.msra.mxu0 %v1134
        %1273 = vmatprep.subr.bf16.mxu0 %v1137
        %1274 = vmatpush1.bf16.msra.mxu0 %v1136
        %1275 = vmatprep.subr.bf16.mxu0 %v1139
        %1276 = vmatpush1.bf16.msra.mxu0 %v1138
        %1277 = vmatprep.subr.bf16.mxu0 %v1141
        %1278 = vmatpush1.bf16.msra.mxu0 %v1140
        %1279 = vmatprep.subr.bf16.mxu0 %v1143
        %1280 = vmatpush1.bf16.msra.mxu0 %v1142
        %1281 = vmatprep.subr.bf16.mxu0 %v1145
        %1282 = vmatpush1.bf16.msra.mxu0 %v1144
        %1283 = vmatprep.subr.bf16.mxu0 %v1147
        %1284 = vmatpush1.bf16.msra.mxu0 %v1146
        %1285 = vmatprep.subr.bf16.mxu0 %v1149
        %1286 = vmatpush1.bf16.msra.mxu0 %v1148
        %1287 = vmatprep.subr.bf16.mxu0 %v1151
        %1288 = vmatpush1.bf16.msra.mxu0 %v1150
        %1289 = vmatprep.subr.bf16.mxu0 %v1153
        %1290 = vmatpush1.bf16.msra.mxu0 %v1152
        %1291 = vmatprep.subr.bf16.mxu0 %v1155
        %1292 = vmatpush1.bf16.msra.mxu0 %v1154
        %1293 = vmatprep.subr.bf16.mxu0 %v1157
        %1294 = vmatpush1.bf16.msra.mxu0 %v1156
        %1295 = vmatprep.subr.bf16.mxu0 %v1159
        %1296 = vmatpush1.bf16.msra.mxu0 %v1158
        %1297 = vmatprep.subr.bf16.mxu0 %v1161
        %1298 = vmatpush1.bf16.msra.mxu0 %v1160
        %1299 = vmatprep.subr.bf16.mxu0 %v1163
        %1300 = vmatpush1.bf16.msra.mxu0 %v1162
        %1301 = vmatprep.mubr.bf16.mxu0 %v843
        %1302 = vmatmul.mubr.bf16.gmra.mrb[0].mxu0 %v842
        %v1303 = vpop.f32.mrb[0].mxu0
        %v1304 = vadd.f32 %v1263, %v1303
        %v1305 = vpop.f32.mrb[0].mxu0
        %v1306 = vadd.f32 %v1265, %v1305
        %v1307 = vpop.f32.mrb[0].mxu0
        %v1308 = vpop.f32.mrb[0].mxu0
        %1309 = vdwg.mxu0
        %v1310 = vadd.f32 %v838, %v1304
        %v1311 = vadd.f32 %v839, %v1306
        %1312 = vst [vmem:[#allocation2] sm:$0xff] %v1310
        %1313 = vst [vmem:[#allocation2 + $0x8] sm:$0xff] %v1311
        // Predicated region
        $region65: #{tpu_custom_call.1} parent=47 // pred_check
          %p1314 = pneg %p336
        $region66: #{tpu_custom_call.1} parent=47 // pred_check_branch
          %1316 = sbr.rel (%p1314) target = $region68
        $region67: #{tpu_custom_call.1} parent=47 // pred_region
          %v1317 = vld [vmem:[#allocation2] sm:$0xff]
          %v1318 = vld [vmem:[#allocation2 + $0x8] sm:$0xff]
          %v1319 = vld [vmem:[%s4] sm:$0x3]
          %v1321 = vlaneseq
          %v1322 = vshrl.u32 %v1321, 7
          %v1323 = vsub.s32 0, %v1322
          %v1324 = vrot.slane %v1319, %v1323
          %v1325 = vlaneseq
          %v1326 = vshrl.u32 %v1325, 7
          %v1327 = vsub.s32 1, %v1326
          %v1328 = vrot.slane %v1319, %v1327
          %v1331 = vadd.f32 %v1317, %v1324
          %v1332 = vadd.f32 %v1318, %v1328
          %v1333 = vld [vmem:[%s297] sm:$0xff]
          %v1334 = vld [vmem:[%s297 + $0x8] sm:$0xff]
          %v1335 = vadd.f32 %v1331, %v1333
          %v1336 = vadd.f32 %v1332, %v1334
          %v1337 = vadd.f32 %v1335, %v1336
          %1338 = vadd.xlane.f32.xlu0 %v1337
          %v1339 = vpop.xlane.xlu0 %1338
          %v1340 = vrcp.pop 256.0
          %v1341 = vmul.f32 %v1339, %v1340
          %v1342 = vsub.f32 %v1335, %v1341
          %v1343 = vsub.f32 %v1336, %v1341
          %v1344 = vmul.f32 %v1342, %v1342
          %v1345 = vmul.f32 %v1343, %v1343
          %v1346 = vadd.f32 %v1344, %v1345
          %1347 = vadd.xlane.f32.xlu0 %v1346
          %v1348 = vpop.xlane.xlu0 %1347
          %v1349 = vmul.f32 %v1348, %v1340
          %v1350 = vadd.f32 %v1349, 1e-05
          %v1351 = vrsqrt.pop %v1350
          %v1352 = vmul.f32 %v1342, %v1351
          %v1353 = vmul.f32 %v1343, %v1351
          %v1354 = vld [vmem:[%s5] sm:$0x3]
          %v1356 = vlaneseq
          %v1357 = vshrl.u32 %v1356, 7
          %v1358 = vsub.s32 0, %v1357
          %v1359 = vrot.slane %v1354, %v1358
          %v1360 = vlaneseq
          %v1361 = vshrl.u32 %v1360, 7
          %v1362 = vsub.s32 1, %v1361
          %v1363 = vrot.slane %v1354, %v1362
          %v1366 = vmul.f32 %v1352, %v1359
          %v1367 = vmul.f32 %v1353, %v1363
          %v1368 = vld [vmem:[%s6] sm:$0x3]
          %v1370 = vlaneseq
          %v1371 = vshrl.u32 %v1370, 7
          %v1372 = vsub.s32 0, %v1371
          %v1373 = vrot.slane %v1368, %v1372
          %v1374 = vlaneseq
          %v1375 = vshrl.u32 %v1374, 7
          %v1376 = vsub.s32 1, %v1375
          %v1377 = vrot.slane %v1368, %v1376
          %v1380 = vadd.f32 %v1366, %v1373
          %v1381 = vadd.f32 %v1367, %v1377
          %1382 = vst [vmem:[%s335] sm:$0xff] %v1380
          %1383 = vst [vmem:[%s335 + $0x8] sm:$0xff] %v1381
        $region68: #{tpu_custom_call.1} parent=47 // pred_fallthru
          _
        %s1384 = sand.u32 %s197, 1
        %s1385 = scalar_lea.sflag [#allocation5], %s1384
        %s1386 = sand.u32 %s197, 1
        %s1387 = smul.addr %s1386, 16
        %s1388 = scalar_lea.vmem [#allocation9], %s1387
        // Predicated region
        $region69: #{tpu_custom_call.1} parent=47 // pred_check
          %p1389 = pneg %p207
        $region70: #{tpu_custom_call.1} parent=47 // pred_check_branch
          %1391 = sbr.rel (%p1389) target = $region72
        $region71: #{tpu_custom_call.1} parent=47 // pred_region
          %s1393 = ssub.s32 256, 256
          %1394 = vsyncadd %s1385, %s1393
          %s1395 = smul.addr %s29, 2
          %s1396 = smul.addr %s1395, 128
          %s1397 = scalar_lea.hbm %s7, %s1396
          %s1399 = sshll.u32 %s1388, 4
          %s1400 = int_to_ptr.vmem [resolvable:$true] %s1399
          %1402 = dma.vmem_to_hbm [thread:$0]  %s1400, 256, %s1397, %s1385
        $region72: #{tpu_custom_call.1} parent=47 // pred_fallthru
          _
      $region48: #{tpu_custom_call.1} parent=5 // pred_fallthru
        _
      %p1403 = scmp.le.s32.totalorder 2, %s20
      // Predicated region
      $region73: #{tpu_custom_call.1} parent=5 // pred_check
        %p1404 = pneg %p1403
      $region74: #{tpu_custom_call.1} parent=5 // pred_check_branch
        %1406 = sbr.rel (%p1404) target = $region76
      $region75: #{tpu_custom_call.1} parent=5 // pred_region
        %s1407 = ssub.s32 %s20, 2
        // Predicated region
        $region77: #{tpu_custom_call.1} parent=75 // pred_check
          %p1408 = pneg %p213
        $region78: #{tpu_custom_call.1} parent=75 // pred_check_branch
          %1410 = sbr.rel (%p1408) target = $region80
        $region79: #{tpu_custom_call.1} parent=75 // pred_region
          %s1411 = sand.u32 %s198, 1
          %s1412 = scalar_lea.sflag [#allocation5], %s1411
          %s1413 = sand.u32 %s198, 1
          %s1414 = smul.addr %s1413, 16
          %s1415 = scalar_lea.vmem [#allocation9], %s1414
          %1416 = dma.done %s1412, 256
        $region80: #{tpu_custom_call.1} parent=75 // pred_fallthru
          _
      $region76: #{tpu_custom_call.1} parent=5 // pred_fallthru
        _
    $region6: #{tpu_custom_call.1} parent=1 // loop_footer
      %s24 = sadd.s32 1, %s20
    $region7: #{tpu_custom_call.1} parent=1 // loop_footer_branch
      %19 = sbr.rel target = $region3
    $region8: #{tpu_custom_call.1} parent=1 // loop_exit
      _
    %1417 = vsyncpa [#allocation4], 1
    %s1418 = scalar_lea.sflag [#allocation4], 1
    %1419 = vsyncpa %s1418, 1
    %1420 = vsyncpa [#allocation7], 1
    %1421 = vsyncpa [#allocation5], 1
    %s1422 = scalar_lea.sflag [#allocation5], 1
    %1423 = vsyncpa %s1422, 1

// kernel: tpu_custom_call.1
$region0: #{tpu_custom_call.1}
  #allocation0 [shape = 'u32[]', space=smem, size = 0x4, offset = 0x4, fixed_abs, tag = 'smem constant byte address 0x4 - core index']
  #allocation1 [shape = 'u32[144,128]{1,0:T(1,128)}', space=vmem, size = 0x12000, scoped, tag = 'internal scratch']
  #allocation2 [shape = 'f32[8,256]{1,0:T(8,128)}', space=vmem, size = 0x2000, scoped, tag = 'scratch operand']
  %s0 = inlined_call_operand.hbm [shape: f32[16,256], index: 0, kind: input, shape index: {}]
  %s1 = inlined_call_operand.hbm [shape: bf16[256,512], index: 1, kind: input, shape index: {}]
  %s2 = inlined_call_operand.vmem [shape: f32[1,512], index: 2, kind: input, shape index: {}]
  %s3 = inlined_call_operand.hbm [shape: bf16[512,256], index: 3, kind: input, shape index: {}]
  %s4 = inlined_call_operand.vmem [shape: f32[1,256], index: 4, kind: input, shape index: {}]
  %s5 = inlined_call_operand.vmem [shape: f32[1,256], index: 5, kind: input, shape index: {}]
  %s6 = inlined_call_operand.vmem [shape: f32[1,256], index: 6, kind: input, shape index: {}]
  %s7 = inlined_call_operand.hbm [shape: f32[16,256], index: 7, kind: output, shape index: {}]
  %s8 = sld [smem:[#allocation0]]
  $region81: #{tpu_custom_call.1} parent=0
    _
  %s10 = ssub.s32 1, %s8
  %s11 = scalar_select 0, %s10, %s8
  $region1: #{tpu_custom_call.1} parent=0
    #allocation3 [shape = 'u8[16384]{0}', space=vmem, size = 0x4000, scoped, tag = 'input window, operand 0']
    #allocation4 [shape = 's32[2]{0}', space=sflag, size = 0x8, scoped, tag = 'scoped memory for tpu_custom_call.1']
    #allocation5 [shape = 's32[2]{0}', space=sflag, size = 0x8, scoped, tag = 'scoped memory for tpu_custom_call.1']
    #allocation6 [shape = 'u8[262144]{0}', space=vmem, size = 0x40000, scoped, tag = 'input window, operand 1, single buffered']
    #allocation7 [shape = 's32[1]{0}', space=sflag, size = 0x4, scoped, tag = 'scoped memory for tpu_custom_call.1']
    #allocation8 [shape = 'u8[262144]{0}', space=vmem, size = 0x40000, scoped, tag = 'input window, operand 3, single buffered']
    #allocation9 [shape = 'u8[16384]{0}', space=vmem, size = 0x4000, scoped, tag = 'output window, operand 0']
    %12 = vsyncpa [#allocation4], 0
    %s13 = scalar_lea.sflag [#allocation4], 1
    %14 = vsyncpa %s13, 0
    %15 = vsyncpa [#allocation7], 0
    %16 = vsyncpa [#allocation5], 0
    %s17 = scalar_lea.sflag [#allocation5], 1
    %18 = vsyncpa %s17, 0
    loop: start=0, step=1, limit=4
    $region2: #{tpu_custom_call.1} parent=1 // loop_pre_header
      _
    $region3: #{tpu_custom_call.1} parent=1 // loop_header
      %s20 = sphi 0, %s24
      %p21 = scmp.ge.s32.totalorder %s20, 4
      %s27 = sphi 0, %s39
      %s28 = sphi 0, %s35
      %s29 = sphi 0, %s27
      %s30 = sphi 0, %s28
      %s31 = sphi 0, %s29
      %s32 = sphi 0, %s30
      %s42 = sphi 0, %s44
      %s45 = sphi 0, %s42
      %s46 = sphi 0, %s45
      %s62 = sphi 0, %s46
      %s66 = sphi 0, %s66
      %s68 = sphi 0, %s66
      %s69 = sphi 0, %s68
      %s83 = sphi 0, %s69
      %s87 = sphi 0, %s87
      %s89 = sphi 0, %s87
      %s90 = sphi 0, %s89
      %s104 = sphi 0, %s90
      %s108 = sphi 0, %s108
      %s110 = sphi 0, %s108
      %s111 = sphi 0, %s110
      %s125 = sphi 0, %s111
      %s129 = sphi 0, %s129
      %s131 = sphi 0, %s129
      %s132 = sphi 0, %s131
      %s146 = sphi 0, %s132
      %s150 = sphi 0, %s150
      %s152 = sphi 0, %s150
      %s153 = sphi 0, %s152
      %s167 = sphi 0, %s153
      %s171 = sphi 0, %s171
      %s173 = sphi 0, %s171
      %s174 = sphi 0, %s173
      %s188 = sphi 0, %s174
      %s194 = sphi 0, %s196
      %s197 = sphi 0, %s194
      %s198 = sphi 0, %s197
      %s214 = sphi 0, %s198
    $region4: #{tpu_custom_call.1} parent=1 // loop_header_branch
      %23 = sbr.rel (%p21) target = $region8
    $region5: #{tpu_custom_call.1} parent=1 // loop_body
      %s25 = ssub.s32 %s20, 1
      %s26 = ssub.s32 %s20, 2
      %s33 = sadd.s32 1, %s28
      %p34 = scmp.ge.s32.totalorder %s33, 1
      %s35 = scalar_select %p34, 0, %s33
      %s36 = sadd.s32 1, %s27
      %s37 = scalar_select %p34, %s36, %s27
      %p38 = scmp.ge.s32.totalorder %s37, 2
      %s39 = scalar_select %p38, 0, %s37
      %s40 = ssub.s32 %s27, %s39
      %p41 = scmp.eq.s32.totalorder %s40, 0
      %s43 = sadd.s32 %s42, 1
      %s44 = scalar_select %p41, %s42, %s43
      %p47 = pneg %p41
      %p48 = scmp.eq.s32.totalorder %s20, 1
      %p49 = por %p47, %p48
      %p50 = scmp.ne.s32.totalorder %s42, %s45
      %p51 = scmp.eq.s32.totalorder %s20, 0
      %p52 = por %p50, %p51
      %p53 = scmp.ne.s32.totalorder %s42, %s45
      %p54 = scmp.eq.s32.totalorder %s25, 1
      %p55 = por %p53, %p54
      %p56 = scmp.ne.s32.totalorder %s45, %s46
      %p57 = scmp.eq.s32.totalorder %s25, 0
      %p58 = por %p56, %p57
      %p59 = scmp.ne.s32.totalorder %s45, %s46
      %p60 = scmp.eq.s32.totalorder %s26, 1
      %p61 = por %p59, %p60
      %p63 = scmp.ne.s32.totalorder %s46, %s62
      %p64 = scmp.eq.s32.totalorder %s26, 0
      %p65 = por %p63, %p64
      %s67 = sadd.s32 %s66, 1
      %p70 = scmp.eq.s32.totalorder %s20, 1
      %p71 = scmp.ne.s32.totalorder %s66, %s68
      %p72 = scmp.eq.s32.totalorder %s20, 0
      %p73 = por %p71, %p72
      %p74 = scmp.ne.s32.totalorder %s66, %s68
      %p75 = scmp.eq.s32.totalorder %s25, 1
      %p76 = por %p74, %p75
      %p77 = scmp.ne.s32.totalorder %s68, %s69
      %p78 = scmp.eq.s32.totalorder %s25, 0
      %p79 = por %p77, %p78
      %p80 = scmp.ne.s32.totalorder %s68, %s69
      %p81 = scmp.eq.s32.totalorder %s26, 1
      %p82 = por %p80, %p81
      %p84 = scmp.ne.s32.totalorder %s69, %s83
      %p85 = scmp.eq.s32.totalorder %s26, 0
      %p86 = por %p84, %p85
      %s88 = sadd.s32 %s87, 1
      %p91 = scmp.eq.s32.totalorder %s20, 1
      %p92 = scmp.ne.s32.totalorder %s87, %s89
      %p93 = scmp.eq.s32.totalorder %s20, 0
      %p94 = por %p92, %p93
      %p95 = scmp.ne.s32.totalorder %s87, %s89
      %p96 = scmp.eq.s32.totalorder %s25, 1
      %p97 = por %p95, %p96
      %p98 = scmp.ne.s32.totalorder %s89, %s90
      %p99 = scmp.eq.s32.totalorder %s25, 0
      %p100 = por %p98, %p99
      %p101 = scmp.ne.s32.totalorder %s89, %s90
      %p102 = scmp.eq.s32.totalorder %s26, 1
      %p103 = por %p101, %p102
      %p105 = scmp.ne.s32.totalorder %s90, %s104
      %p106 = scmp.eq.s32.totalorder %s26, 0
      %p107 = por %p105, %p106
      %s109 = sadd.s32 %s108, 1
      %p112 = scmp.eq.s32.totalorder %s20, 1
      %p113 = scmp.ne.s32.totalorder %s108, %s110
      %p114 = scmp.eq.s32.totalorder %s20, 0
      %p115 = por %p113, %p114
      %p116 = scmp.ne.s32.totalorder %s108, %s110
      %p117 = scmp.eq.s32.totalorder %s25, 1
      %p118 = por %p116, %p117
      %p119 = scmp.ne.s32.totalorder %s110, %s111
      %p120 = scmp.eq.s32.totalorder %s25, 0
      %p121 = por %p119, %p120
      %p122 = scmp.ne.s32.totalorder %s110, %s111
      %p123 = scmp.eq.s32.totalorder %s26, 1
      %p124 = por %p122, %p123
      %p126 = scmp.ne.s32.totalorder %s111, %s125
      %p127 = scmp.eq.s32.totalorder %s26, 0
      %p128 = por %p126, %p127
      %s130 = sadd.s32 %s129, 1
      %p133 = scmp.eq.s32.totalorder %s20, 1
      %p134 = scmp.ne.s32.totalorder %s129, %s131
      %p135 = scmp.eq.s32.totalorder %s20, 0
      %p136 = por %p134, %p135
      %p137 = scmp.ne.s32.totalorder %s129, %s131
      %p138 = scmp.eq.s32.totalorder %s25, 1
      %p139 = por %p137, %p138
      %p140 = scmp.ne.s32.totalorder %s131, %s132
      %p141 = scmp.eq.s32.totalorder %s25, 0
      %p142 = por %p140, %p141
      %p143 = scmp.ne.s32.totalorder %s131, %s132
      %p144 = scmp.eq.s32.totalorder %s26, 1
      %p145 = por %p143, %p144
      %p147 = scmp.ne.s32.totalorder %s132, %s146
      %p148 = scmp.eq.s32.totalorder %s26, 0
      %p149 = por %p147, %p148
      %s151 = sadd.s32 %s150, 1
      %p154 = scmp.eq.s32.totalorder %s20, 1
      %p155 = scmp.ne.s32.totalorder %s150, %s152
      %p156 = scmp.eq.s32.totalorder %s20, 0
      %p157 = por %p155, %p156
      %p158 = scmp.ne.s32.totalorder %s150, %s152
      %p159 = scmp.eq.s32.totalorder %s25, 1
      %p160 = por %p158, %p159
      %p161 = scmp.ne.s32.totalorder %s152, %s153
      %p162 = scmp.eq.s32.totalorder %s25, 0
      %p163 = por %p161, %p162
      %p164 = scmp.ne.s32.totalorder %s152, %s153
      %p165 = scmp.eq.s32.totalorder %s26, 1
      %p166 = por %p164, %p165
      %p168 = scmp.ne.s32.totalorder %s153, %s167
      %p169 = scmp.eq.s32.totalorder %s26, 0
      %p170 = por %p168, %p169
      %s172 = sadd.s32 %s171, 1
      %p175 = scmp.eq.s32.totalorder %s20, 1
      %p176 = scmp.ne.s32.totalorder %s171, %s173
      %p177 = scmp.eq.s32.totalorder %s20, 0
      %p178 = por %p176, %p177
      %p179 = scmp.ne.s32.totalorder %s171, %s173
      %p180 = scmp.eq.s32.totalorder %s25, 1
      %p181 = por %p179, %p180
      %p182 = scmp.ne.s32.totalorder %s173, %s174
      %p183 = scmp.eq.s32.totalorder %s25, 0
      %p184 = por %p182, %p183
      %p185 = scmp.ne.s32.totalorder %s173, %s174
      %p186 = scmp.eq.s32.totalorder %s26, 1
      %p187 = por %p185, %p186
      %p189 = scmp.ne.s32.totalorder %s174, %s188
      %p190 = scmp.eq.s32.totalorder %s26, 0
      %p191 = por %p189, %p190
      %s192 = ssub.s32 %s27, %s39
      %p193 = scmp.eq.s32.totalorder %s192, 0
      %s195 = sadd.s32 %s194, 1
      %s196 = scalar_select %p193, %s194, %s195
      %p199 = pneg %p193
      %p200 = scmp.eq.s32.totalorder %s20, 1
      %p201 = por %p199, %p200
      %p202 = scmp.ne.s32.totalorder %s194, %s197
      %p203 = scmp.eq.s32.totalorder %s20, 0
      %p204 = por %p202, %p203
      %p205 = scmp.ne.s32.totalorder %s194, %s197
      %p206 = scmp.eq.s32.totalorder %s25, 1
      %p207 = por %p205, %p206
      %p208 = scmp.ne.s32.totalorder %s197, %s198
      %p209 = scmp.eq.s32.totalorder %s25, 0
      %p210 = por %p208, %p209
      %p211 = scmp.ne.s32.totalorder %s197, %s198
      %p212 = scmp.eq.s32.totalorder %s26, 1
      %p213 = por %p211, %p212
      %p215 = scmp.ne.s32.totalorder %s198, %s214
      %p216 = scmp.eq.s32.totalorder %s26, 0
      %p217 = por %p215, %p216
      %p218 = scmp.le.s32.totalorder 1, %s20
      %p219 = scmp.lt.s32.totalorder %s20, 3
      %p220 = pnand %p218, %p219
      %p221 = pneg %p220
      // Predicated region
      $region9: #{tpu_custom_call.1} parent=5 // pred_check
        _
      $region10: #{tpu_custom_call.1} parent=5 // pred_check_branch
        %223 = sbr.rel (%p220) target = $region12
      $region11: #{tpu_custom_call.1} parent=5 // pred_region
        %s224 = ssub.s32 %s20, 1
        // Predicated region
        $region13: #{tpu_custom_call.1} parent=11 // pred_check
          %p225 = pneg %p79
        $region14: #{tpu_custom_call.1} parent=11 // pred_check_branch
          %227 = sbr.rel (%p225) target = $region16
        $region15: #{tpu_custom_call.1} parent=11 // pred_region
          %s229 = ssub.s32 8192, 8192
          %230 = vsyncadd [#allocation7], %s229
          %s231 = sshll.u32 [#allocation6], 4
          %s232 = int_to_ptr.vmem [resolvable:$true] %s231
          %237 = dma.hbm_to_vmem [thread:$0]  %s1, 8192, %s232, [#allocation7], 256, 256, 16
        $region16: #{tpu_custom_call.1} parent=11 // pred_fallthru
          _
        // Predicated region
        $region17: #{tpu_custom_call.1} parent=11 // pred_check
          %p238 = pneg %p100
        $region18: #{tpu_custom_call.1} parent=11 // pred_check_branch
          %240 = sbr.rel (%p238) target = $region20
        $region19: #{tpu_custom_call.1} parent=11 // pred_region
          _
        $region20: #{tpu_custom_call.1} parent=11 // pred_fallthru
          _
        // Predicated region
        $region21: #{tpu_custom_call.1} parent=11 // pred_check
          %p241 = pneg %p121
        $region22: #{tpu_custom_call.1} parent=11 // pred_check_branch
          %243 = sbr.rel (%p241) target = $region24
        $region23: #{tpu_custom_call.1} parent=11 // pred_region
          %s245 = ssub.s32 8192, 8192
          %246 = vsyncadd [#allocation7], %s245
          %s247 = sshll.u32 [#allocation8], 4
          %s248 = int_to_ptr.vmem [resolvable:$true] %s247
          %253 = dma.hbm_to_vmem [thread:$0]  %s3, 8192, %s248, [#allocation7], 128, 128, 8
        $region24: #{tpu_custom_call.1} parent=11 // pred_fallthru
          _
        // Predicated region
        $region25: #{tpu_custom_call.1} parent=11 // pred_check
          %p254 = pneg %p142
        $region26: #{tpu_custom_call.1} parent=11 // pred_check_branch
          %256 = sbr.rel (%p254) target = $region28
        $region27: #{tpu_custom_call.1} parent=11 // pred_region
          _
        $region28: #{tpu_custom_call.1} parent=11 // pred_fallthru
          _
        // Predicated region
        $region29: #{tpu_custom_call.1} parent=11 // pred_check
          %p257 = pneg %p163
        $region30: #{tpu_custom_call.1} parent=11 // pred_check_branch
          %259 = sbr.rel (%p257) target = $region32
        $region31: #{tpu_custom_call.1} parent=11 // pred_region
          _
        $region32: #{tpu_custom_call.1} parent=11 // pred_fallthru
          _
        // Predicated region
        $region33: #{tpu_custom_call.1} parent=11 // pred_check
          %p260 = pneg %p184
        $region34: #{tpu_custom_call.1} parent=11 // pred_check_branch
          %262 = sbr.rel (%p260) target = $region36
        $region35: #{tpu_custom_call.1} parent=11 // pred_region
          _
        $region36: #{tpu_custom_call.1} parent=11 // pred_fallthru
          _
      $region12: #{tpu_custom_call.1} parent=5 // pred_fallthru
        _
      %p263 = scmp.lt.s32.totalorder %s20, 2
      // Predicated region
      $region37: #{tpu_custom_call.1} parent=5 // pred_check
        %p264 = pneg %p263
      $region38: #{tpu_custom_call.1} parent=5 // pred_check_branch
        %266 = sbr.rel (%p264) target = $region40
      $region39: #{tpu_custom_call.1} parent=5 // pred_region
        // Predicated region
        $region41: #{tpu_custom_call.1} parent=39 // pred_check
          %p267 = pneg %p52
        $region42: #{tpu_custom_call.1} parent=39 // pred_check_branch
          %269 = sbr.rel (%p267) target = $region44
        $region43: #{tpu_custom_call.1} parent=39 // pred_region
          %s270 = sand.u32 %s42, 1
          %s271 = scalar_lea.sflag [#allocation4], %s270
          %s272 = sand.u32 %s42, 1
          %s273 = smul.addr %s272, 16
          %s274 = scalar_lea.vmem [#allocation3], %s273
          %s276 = ssub.s32 256, 256
          %277 = vsyncadd %s271, %s276
          %s278 = smul.addr %s27, 2
          %s279 = smul.addr %s278, 128
          %s280 = scalar_lea.hbm %s0, %s279
          %s282 = sshll.u32 %s274, 4
          %s283 = int_to_ptr.vmem [resolvable:$true] %s282
          %285 = dma.hbm_to_vmem [thread:$0]  %s280, 256, %s283, %s271
        $region44: #{tpu_custom_call.1} parent=39 // pred_fallthru
          _
      $region40: #{tpu_custom_call.1} parent=5 // pred_fallthru
        _
      %p286 = scmp.le.s32.totalorder 1, %s20
      %p287 = scmp.lt.s32.totalorder %s20, 3
      %p288 = pnand %p286, %p287
      %p289 = pneg %p288
      // Predicated region
      $region45: #{tpu_custom_call.1} parent=5 // pred_check
        _
      $region46: #{tpu_custom_call.1} parent=5 // pred_check_branch
        %291 = sbr.rel (%p288) target = $region48
      $region47: #{tpu_custom_call.1} parent=5 // pred_region
        %s292 = ssub.s32 %s20, 1
        %s293 = sand.u32 %s45, 1
        %s294 = scalar_lea.sflag [#allocation4], %s293
        %s295 = sand.u32 %s45, 1
        %s296 = smul.addr %s295, 16
        %s297 = scalar_lea.vmem [#allocation3], %s296
        // Predicated region
        $region49: #{tpu_custom_call.1} parent=47 // pred_check
          %p298 = pneg %p58
        $region50: #{tpu_custom_call.1} parent=47 // pred_check_branch
          %300 = sbr.rel (%p298) target = $region52
        $region51: #{tpu_custom_call.1} parent=47 // pred_region
          %301 = dma.done %s294, 256
        $region52: #{tpu_custom_call.1} parent=47 // pred_fallthru
          _
        // Predicated region
        $region53: #{tpu_custom_call.1} parent=47 // pred_check
          %p302 = pneg %p79
        $region54: #{tpu_custom_call.1} parent=47 // pred_check_branch
          %304 = sbr.rel (%p302) target = $region56
        $region55: #{tpu_custom_call.1} parent=47 // pred_region
          %305 = dma.done [#allocation7], 8192
        $region56: #{tpu_custom_call.1} parent=47 // pred_fallthru
          _
        // Predicated region
        $region57: #{tpu_custom_call.1} parent=47 // pred_check
          %p306 = pneg %p121
        $region58: #{tpu_custom_call.1} parent=47 // pred_check_branch
          %308 = sbr.rel (%p306) target = $region60
        $region59: #{tpu_custom_call.1} parent=47 // pred_region
          %309 = dma.done [#allocation7], 8192
        $region60: #{tpu_custom_call.1} parent=47 // pred_fallthru
          _
        %s310 = sand.u32 %s45, 1
        %s311 = scalar_lea.sflag [#allocation4], %s310
        %s312 = sand.u32 %s45, 1
        %s313 = smul.addr %s312, 16
        %s314 = scalar_lea.vmem [#allocation3], %s313
        %p315 = pneg %p58
        %p316 = pneg %p55
        %p317 = pneg %p79
        %p318 = pneg %p76
        %p319 = pneg %p100
        %p320 = pneg %p97
        %p321 = pneg %p121
        %p322 = pneg %p118
        %p323 = pneg %p142
        %p324 = pneg %p139
        %p325 = pneg %p163
        %p326 = pneg %p160
        %p327 = pneg %p184
        %p328 = pneg %p181
        %p329 = pneg %p210
        %p330 = pneg %p207
        %s331 = sand.u32 %s197, 1
        %s332 = scalar_lea.sflag [#allocation5], %s331
        %s333 = sand.u32 %s197, 1
        %s334 = smul.addr %s333, 16
        %s335 = scalar_lea.vmem [#allocation9], %s334
        %p336 = scmp.eq.s32.totalorder %s30, 0
        // Predicated region
        $region61: #{tpu_custom_call.1} parent=47 // pred_check
          %p337 = pneg %p336
        $region62: #{tpu_custom_call.1} parent=47 // pred_check_branch
          %339 = sbr.rel (%p337) target = $region64
        $region63: #{tpu_custom_call.1} parent=47 // pred_region
          %340 = vst [vmem:[#allocation2] sm:$0xff] 0.0
          %341 = vst [vmem:[#allocation2 + $0x8] sm:$0xff] 0.0
        $region64: #{tpu_custom_call.1} parent=47 // pred_fallthru
          _
        %v342 = vld [vmem:[%s297] sm:$0xff]
        %v343 = vld [vmem:[%s297 + $0x8] sm:$0xff]
        %v344 = vpack.c.bf16 %v342, %v342
        %v345 = vpack.c.bf16 %v343, %v343
        %v346 = vld [vmem:[#allocation6] sm:$0xff]
        %v347 = vld [vmem:[#allocation6 + $0x8] sm:$0xff]
        %v348 = vld [vmem:[#allocation6 + $0x10] sm:$0xff]
        %v349 = vld [vmem:[#allocation6 + $0x18] sm:$0xff]
        %v350 = vld [vmem:[#allocation6 + $0x20] sm:$0xff]
        %v351 = vld [vmem:[#allocation6 + $0x28] sm:$0xff]
        %v352 = vld [vmem:[#allocation6 + $0x30] sm:$0xff]
        %v353 = vld [vmem:[#allocation6 + $0x38] sm:$0xff]
        %v354 = vld [vmem:[#allocation6 + $0x40] sm:$0xff]
        %v355 = vld [vmem:[#allocation6 + $0x48] sm:$0xff]
        %v356 = vld [vmem:[#allocation6 + $0x50] sm:$0xff]
        %v357 = vld [vmem:[#allocation6 + $0x58] sm:$0xff]
        %v358 = vld [vmem:[#allocation6 + $0x60] sm:$0xff]
        %v359 = vld [vmem:[#allocation6 + $0x68] sm:$0xff]
        %v360 = vld [vmem:[#allocation6 + $0x70] sm:$0xff]
        %v361 = vld [vmem:[#allocation6 + $0x78] sm:$0xff]
        %v362 = vld [vmem:[#allocation6 + $0x80] sm:$0xff]
        %v363 = vld [vmem:[#allocation6 + $0x88] sm:$0xff]
        %v364 = vld [vmem:[#allocation6 + $0x90] sm:$0xff]
        %v365 = vld [vmem:[#allocation6 + $0x98] sm:$0xff]
        %v366 = vld [vmem:[#allocation6 + $0xa0] sm:$0xff]
        %v367 = vld [vmem:[#allocation6 + $0xa8] sm:$0xff]
        %v368 = vld [vmem:[#allocation6 + $0xb0] sm:$0xff]
        %v369 = vld [vmem:[#allocation6 + $0xb8] sm:$0xff]
        %v370 = vld [vmem:[#allocation6 + $0xc0] sm:$0xff]
        %v371 = vld [vmem:[#allocation6 + $0xc8] sm:$0xff]
        %v372 = vld [vmem:[#allocation6 + $0xd0] sm:$0xff]
        %v373 = vld [vmem:[#allocation6 + $0xd8] sm:$0xff]
        %v374 = vld [vmem:[#allocation6 + $0xe0] sm:$0xff]
        %v375 = vld [vmem:[#allocation6 + $0xe8] sm:$0xff]
        %v376 = vld [vmem:[#allocation6 + $0xf0] sm:$0xff]
        %v377 = vld [vmem:[#allocation6 + $0xf8] sm:$0xff]
        %v378 = vld [vmem:[#allocation6 + $0x100] sm:$0xff]
        %v379 = vld [vmem:[#allocation6 + $0x108] sm:$0xff]
        %v380 = vld [vmem:[#allocation6 + $0x110] sm:$0xff]
        %v381 = vld [vmem:[#allocation6 + $0x118] sm:$0xff]
        %v382 = vld [vmem:[#allocation6 + $0x120] sm:$0xff]
        %v383 = vld [vmem:[#allocation6 + $0x128] sm:$0xff]
        %v384 = vld [vmem:[#allocation6 + $0x130] sm:$0xff]
        %v385 = vld [vmem:[#allocation6 + $0x138] sm:$0xff]
        %v386 = vld [vmem:[#allocation6 + $0x140] sm:$0xff]
        %v387 = vld [vmem:[#allocation6 + $0x148] sm:$0xff]
        %v388 = vld [vmem:[#allocation6 + $0x150] sm:$0xff]
        %v389 = vld [vmem:[#allocation6 + $0x158] sm:$0xff]
        %v390 = vld [vmem:[#allocation6 + $0x160] sm:$0xff]
        %v391 = vld [vmem:[#allocation6 + $0x168] sm:$0xff]
        %v392 = vld [vmem:[#allocation6 + $0x170] sm:$0xff]
        %v393 = vld [vmem:[#allocation6 + $0x178] sm:$0xff]
        %v394 = vld [vmem:[#allocation6 + $0x180] sm:$0xff]
        %v395 = vld [vmem:[#allocation6 + $0x188] sm:$0xff]
        %v396 = vld [vmem:[#allocation6 + $0x190] sm:$0xff]
        %v397 = vld [vmem:[#allocation6 + $0x198] sm:$0xff]
        %v398 = vld [vmem:[#allocation6 + $0x1a0] sm:$0xff]
        %v399 = vld [vmem:[#allocation6 + $0x1a8] sm:$0xff]
        %v400 = vld [vmem:[#allocation6 + $0x1b0] sm:$0xff]
        %v401 = vld [vmem:[#allocation6 + $0x1b8] sm:$0xff]
        %v402 = vld [vmem:[#allocation6 + $0x1c0] sm:$0xff]
        %v403 = vld [vmem:[#allocation6 + $0x1c8] sm:$0xff]
        %v404 = vld [vmem:[#allocation6 + $0x1d0] sm:$0xff]
        %v405 = vld [vmem:[#allocation6 + $0x1d8] sm:$0xff]
        %v406 = vld [vmem:[#allocation6 + $0x1e0] sm:$0xff]
        %v407 = vld [vmem:[#allocation6 + $0x1e8] sm:$0xff]
        %v408 = vld [vmem:[#allocation6 + $0x1f0] sm:$0xff]
        %v409 = vld [vmem:[#allocation6 + $0x1f8] sm:$0xff]
        %v410 = vld [vmem:[%s2] sm:$0xf]
        %v412 = vlaneseq
        %v413 = vshrl.u32 %v412, 7
        %v414 = vsub.s32 0, %v413
        %v415 = vrot.slane %v410, %v414
        %v416 = vlaneseq
        %v417 = vshrl.u32 %v416, 7
        %v418 = vsub.s32 1, %v417
        %v419 = vrot.slane %v410, %v418
        %v420 = vlaneseq
        %v421 = vshrl.u32 %v420, 7
        %v422 = vsub.s32 2, %v421
        %v423 = vrot.slane %v410, %v422
        %v424 = vlaneseq
        %v425 = vshrl.u32 %v424, 7
        %v426 = vsub.s32 3, %v425
        %v427 = vrot.slane %v410, %v426
        %v496 = vunpack.c.l.b16 %v346
        %v497 = vunpack.c.h.b16 %v346
        %v498 = vunpack.c.l.b16 %v347
        %v499 = vunpack.c.h.b16 %v347
        %v500 = vunpack.c.l.b16 %v348
        %v501 = vunpack.c.h.b16 %v348
        %v502 = vunpack.c.l.b16 %v349
        %v503 = vunpack.c.h.b16 %v349
        %v504 = vunpack.c.l.b16 %v350
        %v505 = vunpack.c.h.b16 %v350
        %v506 = vunpack.c.l.b16 %v351
        %v507 = vunpack.c.h.b16 %v351
        %v508 = vunpack.c.l.b16 %v352
        %v509 = vunpack.c.h.b16 %v352
        %v510 = vunpack.c.l.b16 %v353
        %v511 = vunpack.c.h.b16 %v353
        %v512 = vunpack.c.l.b16 %v354
        %v513 = vunpack.c.h.b16 %v354
        %v514 = vunpack.c.l.b16 %v355
        %v515 = vunpack.c.h.b16 %v355
        %v516 = vunpack.c.l.b16 %v356
        %v517 = vunpack.c.h.b16 %v356
        %v518 = vunpack.c.l.b16 %v357
        %v519 = vunpack.c.h.b16 %v357
        %v520 = vunpack.c.l.b16 %v358
        %v521 = vunpack.c.h.b16 %v358
        %v522 = vunpack.c.l.b16 %v359
        %v523 = vunpack.c.h.b16 %v359
        %v524 = vunpack.c.l.b16 %v360
        %v525 = vunpack.c.h.b16 %v360
        %v526 = vunpack.c.l.b16 %v361
        %v527 = vunpack.c.h.b16 %v361
        %v528 = vunpack.c.l.b16 %v362
        %v529 = vunpack.c.h.b16 %v362
        %v530 = vunpack.c.l.b16 %v363
        %v531 = vunpack.c.h.b16 %v363
        %v532 = vunpack.c.l.b16 %v364
        %v533 = vunpack.c.h.b16 %v364
        %v534 = vunpack.c.l.b16 %v365
        %v535 = vunpack.c.h.b16 %v365
        %v536 = vunpack.c.l.b16 %v366
        %v537 = vunpack.c.h.b16 %v366
        %v538 = vunpack.c.l.b16 %v367
        %v539 = vunpack.c.h.b16 %v367
        %v540 = vunpack.c.l.b16 %v368
        %v541 = vunpack.c.h.b16 %v368
        %v542 = vunpack.c.l.b16 %v369
        %v543 = vunpack.c.h.b16 %v369
        %v544 = vunpack.c.l.b16 %v370
        %v545 = vunpack.c.h.b16 %v370
        %v546 = vunpack.c.l.b16 %v371
        %v547 = vunpack.c.h.b16 %v371
        %v548 = vunpack.c.l.b16 %v372
        %v549 = vunpack.c.h.b16 %v372
        %v550 = vunpack.c.l.b16 %v373
        %v551 = vunpack.c.h.b16 %v373
        %v552 = vunpack.c.l.b16 %v374
        %v553 = vunpack.c.h.b16 %v374
        %v554 = vunpack.c.l.b16 %v375
        %v555 = vunpack.c.h.b16 %v375
        %v556 = vunpack.c.l.b16 %v376
        %v557 = vunpack.c.h.b16 %v376
        %v558 = vunpack.c.l.b16 %v377
        %v559 = vunpack.c.h.b16 %v377
        %v560 = vunpack.c.l.b16 %v378
        %v561 = vunpack.c.h.b16 %v378
        %v562 = vunpack.c.l.b16 %v379
        %v563 = vunpack.c.h.b16 %v379
        %v564 = vunpack.c.l.b16 %v380
        %v565 = vunpack.c.h.b16 %v380
        %v566 = vunpack.c.l.b16 %v381
        %v567 = vunpack.c.h.b16 %v381
        %v568 = vunpack.c.l.b16 %v382
        %v569 = vunpack.c.h.b16 %v382
        %v570 = vunpack.c.l.b16 %v383
        %v571 = vunpack.c.h.b16 %v383
        %v572 = vunpack.c.l.b16 %v384
        %v573 = vunpack.c.h.b16 %v384
        %v574 = vunpack.c.l.b16 %v385
        %v575 = vunpack.c.h.b16 %v385
        %v576 = vunpack.c.l.b16 %v386
        %v577 = vunpack.c.h.b16 %v386
        %v578 = vunpack.c.l.b16 %v387
        %v579 = vunpack.c.h.b16 %v387
        %v580 = vunpack.c.l.b16 %v388
        %v581 = vunpack.c.h.b16 %v388
        %v582 = vunpack.c.l.b16 %v389
        %v583 = vunpack.c.h.b16 %v389
        %v584 = vunpack.c.l.b16 %v390
        %v585 = vunpack.c.h.b16 %v390
        %v586 = vunpack.c.l.b16 %v391
        %v587 = vunpack.c.h.b16 %v391
        %v588 = vunpack.c.l.b16 %v392
        %v589 = vunpack.c.h.b16 %v392
        %v590 = vunpack.c.l.b16 %v393
        %v591 = vunpack.c.h.b16 %v393
        %v592 = vunpack.c.l.b16 %v394
        %v593 = vunpack.c.h.b16 %v394
        %v594 = vunpack.c.l.b16 %v395
        %v595 = vunpack.c.h.b16 %v395
        %v596 = vunpack.c.l.b16 %v396
        %v597 = vunpack.c.h.b16 %v396
        %v598 = vunpack.c.l.b16 %v397
        %v599 = vunpack.c.h.b16 %v397
        %v600 = vunpack.c.l.b16 %v398
        %v601 = vunpack.c.h.b16 %v398
        %v602 = vunpack.c.l.b16 %v399
        %v603 = vunpack.c.h.b16 %v399
        %v604 = vunpack.c.l.b16 %v400
        %v605 = vunpack.c.h.b16 %v400
        %v606 = vunpack.c.l.b16 %v401
        %v607 = vunpack.c.h.b16 %v401
        %v608 = vunpack.c.l.b16 %v402
        %v609 = vunpack.c.h.b16 %v402
        %v610 = vunpack.c.l.b16 %v403
        %v611 = vunpack.c.h.b16 %v403
        %v612 = vunpack.c.l.b16 %v404
        %v613 = vunpack.c.h.b16 %v404
        %v614 = vunpack.c.l.b16 %v405
        %v615 = vunpack.c.h.b16 %v405
        %v616 = vunpack.c.l.b16 %v406
        %v617 = vunpack.c.h.b16 %v406
        %v618 = vunpack.c.l.b16 %v407
        %v619 = vunpack.c.h.b16 %v407
        %v620 = vunpack.c.l.b16 %v408
        %v621 = vunpack.c.h.b16 %v408
        %v622 = vunpack.c.l.b16 %v409
        %v623 = vunpack.c.h.b16 %v409
        %v624 = vpack.c.b16 %v500, %v496
        %v625 = vpack.c.b16 %v501, %v497
        %v626 = vpack.c.b16 %v502, %v498
        %v627 = vpack.c.b16 %v503, %v499
        %v628 = vpack.c.b16 %v508, %v504
        %v629 = vpack.c.b16 %v509, %v505
        %v630 = vpack.c.b16 %v510, %v506
        %v631 = vpack.c.b16 %v511, %v507
        %v632 = vpack.c.b16 %v516, %v512
        %v633 = vpack.c.b16 %v517, %v513
        %v634 = vpack.c.b16 %v518, %v514
        %v635 = vpack.c.b16 %v519, %v515
        %v636 = vpack.c.b16 %v524, %v520
        %v637 = vpack.c.b16 %v525, %v521
        %v638 = vpack.c.b16 %v526, %v522
        %v639 = vpack.c.b16 %v527, %v523
        %v640 = vpack.c.b16 %v532, %v528
        %v641 = vpack.c.b16 %v533, %v529
        %v642 = vpack.c.b16 %v534, %v530
        %v643 = vpack.c.b16 %v535, %v531
        %v644 = vpack.c.b16 %v540, %v536
        %v645 = vpack.c.b16 %v541, %v537
        %v646 = vpack.c.b16 %v542, %v538
        %v647 = vpack.c.b16 %v543, %v539
        %v648 = vpack.c.b16 %v548, %v544
        %v649 = vpack.c.b16 %v549, %v545
        %v650 = vpack.c.b16 %v550, %v546
        %v651 = vpack.c.b16 %v551, %v547
        %v652 = vpack.c.b16 %v556, %v552
        %v653 = vpack.c.b16 %v557, %v553
        %v654 = vpack.c.b16 %v558, %v554
        %v655 = vpack.c.b16 %v559, %v555
        %v656 = vpack.c.b16 %v564, %v560
        %v657 = vpack.c.b16 %v565, %v561
        %v658 = vpack.c.b16 %v566, %v562
        %v659 = vpack.c.b16 %v567, %v563
        %v660 = vpack.c.b16 %v572, %v568
        %v661 = vpack.c.b16 %v573, %v569
        %v662 = vpack.c.b16 %v574, %v570
        %v663 = vpack.c.b16 %v575, %v571
        %v664 = vpack.c.b16 %v580, %v576
        %v665 = vpack.c.b16 %v581, %v577
        %v666 = vpack.c.b16 %v582, %v578
        %v667 = vpack.c.b16 %v583, %v579
        %v668 = vpack.c.b16 %v588, %v584
        %v669 = vpack.c.b16 %v589, %v585
        %v670 = vpack.c.b16 %v590, %v586
        %v671 = vpack.c.b16 %v591, %v587
        %v672 = vpack.c.b16 %v596, %v592
        %v673 = vpack.c.b16 %v597, %v593
        %v674 = vpack.c.b16 %v598, %v594
        %v675 = vpack.c.b16 %v599, %v595
        %v676 = vpack.c.b16 %v604, %v600
        %v677 = vpack.c.b16 %v605, %v601
        %v678 = vpack.c.b16 %v606, %v602
        %v679 = vpack.c.b16 %v607, %v603
        %v680 = vpack.c.b16 %v612, %v608
        %v681 = vpack.c.b16 %v613, %v609
        %v682 = vpack.c.b16 %v614, %v610
        %v683 = vpack.c.b16 %v615, %v611
        %v684 = vpack.c.b16 %v620, %v616
        %v685 = vpack.c.b16 %v621, %v617
        %v686 = vpack.c.b16 %v622, %v618
        %v687 = vpack.c.b16 %v623, %v619
        %752 = vmatprep.subr.bf16.mxu0 %v625
        %753 = vmatpush1.bf16.msra.mxu0 %v624
        %754 = vmatprep.subr.bf16.mxu0 %v629
        %755 = vmatpush1.bf16.msra.mxu0 %v628
        %756 = vmatprep.subr.bf16.mxu0 %v633
        %757 = vmatpush1.bf16.msra.mxu0 %v632
        %758 = vmatprep.subr.bf16.mxu0 %v637
        %759 = vmatpush1.bf16.msra.mxu0 %v636
        %760 = vmatprep.subr.bf16.mxu0 %v641
        %761 = vmatpush1.bf16.msra.mxu0 %v640
        %762 = vmatprep.subr.bf16.mxu0 %v645
        %763 = vmatpush1.bf16.msra.mxu0 %v644
        %764 = vmatprep.subr.bf16.mxu0 %v649
        %765 = vmatpush1.bf16.msra.mxu0 %v648
        %766 = vmatprep.subr.bf16.mxu0 %v653
        %767 = vmatpush1.bf16.msra.mxu0 %v652
        %768 = vmatprep.subr.bf16.mxu0 %v657
        %769 = vmatpush1.bf16.msra.mxu0 %v656
        %770 = vmatprep.subr.bf16.mxu0 %v661
        %771 = vmatpush1.bf16.msra.mxu0 %v660
        %772 = vmatprep.subr.bf16.mxu0 %v665
        %773 = vmatpush1.bf16.msra.mxu0 %v664
        %774 = vmatprep.subr.bf16.mxu0 %v669
        %775 = vmatpush1.bf16.msra.mxu0 %v668
        %776 = vmatprep.subr.bf16.mxu0 %v673
        %777 = vmatpush1.bf16.msra.mxu0 %v672
        %778 = vmatprep.subr.bf16.mxu0 %v677
        %779 = vmatpush1.bf16.msra.mxu0 %v676
        %780 = vmatprep.subr.bf16.mxu0 %v681
        %781 = vmatpush1.bf16.msra.mxu0 %v680
        %782 = vmatprep.subr.bf16.mxu0 %v685
        %783 = vmatpush1.bf16.msra.mxu0 %v684
        %784 = vmatprep.mubr.bf16.mxu0 %v345
        %785 = vmatmul.mubr.bf16.gmra.mrb[0].mxu0 %v344
        %v786 = vpop.f32.mrb[0].mxu0
        %v787 = vadd.f32 %v415, %v786
        %v788 = vpop.f32.mrb[0].mxu0
        %v789 = vadd.f32 %v419, %v788
        %v790 = vpop.f32.mrb[0].mxu0
        %v791 = vpop.f32.mrb[0].mxu0
        %792 = vdwg.mxu0
        %793 = vmatprep.subr.bf16.mxu0 %v627
        %794 = vmatpush1.bf16.msra.mxu0 %v626
        %795 = vmatprep.subr.bf16.mxu0 %v631
        %796 = vmatpush1.bf16.msra.mxu0 %v630
        %797 = vmatprep.subr.bf16.mxu0 %v635
        %798 = vmatpush1.bf16.msra.mxu0 %v634
        %799 = vmatprep.subr.bf16.mxu0 %v639
        %800 = vmatpush1.bf16.msra.mxu0 %v638
        %801 = vmatprep.subr.bf16.mxu0 %v643
        %802 = vmatpush1.bf16.msra.mxu0 %v642
        %803 = vmatprep.subr.bf16.mxu0 %v647
        %804 = vmatpush1.bf16.msra.mxu0 %v646
        %805 = vmatprep.subr.bf16.mxu0 %v651
        %806 = vmatpush1.bf16.msra.mxu0 %v650
        %807 = vmatprep.subr.bf16.mxu0 %v655
        %808 = vmatpush1.bf16.msra.mxu0 %v654
        %809 = vmatprep.subr.bf16.mxu0 %v659
        %810 = vmatpush1.bf16.msra.mxu0 %v658
        %811 = vmatprep.subr.bf16.mxu0 %v663
        %812 = vmatpush1.bf16.msra.mxu0 %v662
        %813 = vmatprep.subr.bf16.mxu0 %v667
        %814 = vmatpush1.bf16.msra.mxu0 %v666
        %815 = vmatprep.subr.bf16.mxu0 %v671
        %816 = vmatpush1.bf16.msra.mxu0 %v670
        %817 = vmatprep.subr.bf16.mxu0 %v675
        %818 = vmatpush1.bf16.msra.mxu0 %v674
        %819 = vmatprep.subr.bf16.mxu0 %v679
        %820 = vmatpush1.bf16.msra.mxu0 %v678
        %821 = vmatprep.subr.bf16.mxu0 %v683
        %822 = vmatpush1.bf16.msra.mxu0 %v682
        %823 = vmatprep.subr.bf16.mxu0 %v687
        %824 = vmatpush1.bf16.msra.mxu0 %v686
        %825 = vmatprep.mubr.bf16.mxu0 %v345
        %826 = vmatmul.mubr.bf16.gmra.mrb[0].mxu0 %v344
        %v827 = vpop.f32.mrb[0].mxu0
        %v828 = vadd.f32 %v423, %v827
        %v829 = vpop.f32.mrb[0].mxu0
        %v830 = vadd.f32 %v427, %v829
        %v831 = vpop.f32.mrb[0].mxu0
        %v832 = vpop.f32.mrb[0].mxu0
        %833 = vdwg.mxu0
        %v834 = vmax.f32 %v787, 0.0
        %v835 = vmax.f32 %v789, 0.0
        %v836 = vmax.f32 %v828, 0.0
        %v837 = vmax.f32 %v830, 0.0
        %v838 = vld [vmem:[#allocation2] sm:$0xff]
        %v839 = vld [vmem:[#allocation2 + $0x8] sm:$0xff]
        %v840 = vpack.c.bf16 %v834, %v834
        %v841 = vpack.c.bf16 %v835, %v835
        %v842 = vpack.c.bf16 %v836, %v836
        %v843 = vpack.c.bf16 %v837, %v837
        %v844 = vld [vmem:[#allocation8] sm:$0xff]
        %v845 = vld [vmem:[#allocation8 + $0x8] sm:$0xff]
        %v846 = vld [vmem:[#allocation8 + $0x10] sm:$0xff]
        %v847 = vld [vmem:[#allocation8 + $0x18] sm:$0xff]
        %v848 = vld [vmem:[#allocation8 + $0x20] sm:$0xff]
        %v849 = vld [vmem:[#allocation8 + $0x28] sm:$0xff]
        %v850 = vld [vmem:[#allocation8 + $0x30] sm:$0xff]
        %v851 = vld [vmem:[#allocation8 + $0x38] sm:$0xff]
        %v852 = vld [vmem:[#allocation8 + $0x40] sm:$0xff]
        %v853 = vld [vmem:[#allocation8 + $0x48] sm:$0xff]
        %v854 = vld [vmem:[#allocation8 + $0x50] sm:$0xff]
        %v855 = vld [vmem:[#allocation8 + $0x58] sm:$0xff]
        %v856 = vld [vmem:[#allocation8 + $0x60] sm:$0xff]
        %v857 = vld [vmem:[#allocation8 + $0x68] sm:$0xff]
        %v858 = vld [vmem:[#allocation8 + $0x70] sm:$0xff]
        %v859 = vld [vmem:[#allocation8 + $0x78] sm:$0xff]
        %v860 = vld [vmem:[#allocation8 + $0x80] sm:$0xff]
        %v861 = vld [vmem:[#allocation8 + $0x88] sm:$0xff]
        %v862 = vld [vmem:[#allocation8 + $0x90] sm:$0xff]
        %v863 = vld [vmem:[#allocation8 + $0x98] sm:$0xff]
        %v864 = vld [vmem:[#allocation8 + $0xa0] sm:$0xff]
        %v865 = vld [vmem:[#allocation8 + $0xa8] sm:$0xff]
        %v866 = vld [vmem:[#allocation8 + $0xb0] sm:$0xff]
        %v867 = vld [vmem:[#allocation8 + $0xb8] sm:$0xff]
        %v868 = vld [vmem:[#allocation8 + $0xc0] sm:$0xff]
        %v869 = vld [vmem:[#allocation8 + $0xc8] sm:$0xff]
        %v870 = vld [vmem:[#allocation8 + $0xd0] sm:$0xff]
        %v871 = vld [vmem:[#allocation8 + $0xd8] sm:$0xff]
        %v872 = vld [vmem:[#allocation8 + $0xe0] sm:$0xff]
        %v873 = vld [vmem:[#allocation8 + $0xe8] sm:$0xff]
        %v874 = vld [vmem:[#allocation8 + $0xf0] sm:$0xff]
        %v875 = vld [vmem:[#allocation8 + $0xf8] sm:$0xff]
        %v876 = vld [vmem:[#allocation8 + $0x100] sm:$0xff]
        %v877 = vld [vmem:[#allocation8 + $0x108] sm:$0xff]
        %v878 = vld [vmem:[#allocation8 + $0x110] sm:$0xff]
        %v879 = vld [vmem:[#allocation8 + $0x118] sm:$0xff]
        %v880 = vld [vmem:[#allocation8 + $0x120] sm:$0xff]
        %v881 = vld [vmem:[#allocation8 + $0x128] sm:$0xff]
        %v882 = vld [vmem:[#allocation8 + $0x130] sm:$0xff]
        %v883 = vld [vmem:[#allocation8 + $0x138] sm:$0xff]
        %v884 = vld [vmem:[#allocation8 + $0x140] sm:$0xff]
        %v885 = vld [vmem:[#allocation8 + $0x148] sm:$0xff]
        %v886 = vld [vmem:[#allocation8 + $0x150] sm:$0xff]
        %v887 = vld [vmem:[#allocation8 + $0x158] sm:$0xff]
        %v888 = vld [vmem:[#allocation8 + $0x160] sm:$0xff]
        %v889 = vld [vmem:[#allocation8 + $0x168] sm:$0xff]
        %v890 = vld [vmem:[#allocation8 + $0x170] sm:$0xff]
        %v891 = vld [vmem:[#allocation8 + $0x178] sm:$0xff]
        %v892 = vld [vmem:[#allocation8 + $0x180] sm:$0xff]
        %v893 = vld [vmem:[#allocation8 + $0x188] sm:$0xff]
        %v894 = vld [vmem:[#allocation8 + $0x190] sm:$0xff]
        %v895 = vld [vmem:[#allocation8 + $0x198] sm:$0xff]
        %v896 = vld [vmem:[#allocation8 + $0x1a0] sm:$0xff]
        %v897 = vld [vmem:[#allocation8 + $0x1a8] sm:$0xff]
        %v898 = vld [vmem:[#allocation8 + $0x1b0] sm:$0xff]
        %v899 = vld [vmem:[#allocation8 + $0x1b8] sm:$0xff]
        %v900 = vld [vmem:[#allocation8 + $0x1c0] sm:$0xff]
        %v901 = vld [vmem:[#allocation8 + $0x1c8] sm:$0xff]
        %v902 = vld [vmem:[#allocation8 + $0x1d0] sm:$0xff]
        %v903 = vld [vmem:[#allocation8 + $0x1d8] sm:$0xff]
        %v904 = vld [vmem:[#allocation8 + $0x1e0] sm:$0xff]
        %v905 = vld [vmem:[#allocation8 + $0x1e8] sm:$0xff]
        %v906 = vld [vmem:[#allocation8 + $0x1f0] sm:$0xff]
        %v907 = vld [vmem:[#allocation8 + $0x1f8] sm:$0xff]
        %v972 = vunpack.c.l.b16 %v844
        %v973 = vunpack.c.h.b16 %v844
        %v974 = vunpack.c.l.b16 %v845
        %v975 = vunpack.c.h.b16 %v845
        %v976 = vunpack.c.l.b16 %v846
        %v977 = vunpack.c.h.b16 %v846
        %v978 = vunpack.c.l.b16 %v847
        %v979 = vunpack.c.h.b16 %v847
        %v980 = vunpack.c.l.b16 %v848
        %v981 = vunpack.c.h.b16 %v848
        %v982 = vunpack.c.l.b16 %v849
        %v983 = vunpack.c.h.b16 %v849
        %v984 = vunpack.c.l.b16 %v850
        %v985 = vunpack.c.h.b16 %v850
        %v986 = vunpack.c.l.b16 %v851
        %v987 = vunpack.c.h.b16 %v851
        %v988 = vunpack.c.l.b16 %v852
        %v989 = vunpack.c.h.b16 %v852
        %v990 = vunpack.c.l.b16 %v853
        %v991 = vunpack.c.h.b16 %v853
        %v992 = vunpack.c.l.b16 %v854
        %v993 = vunpack.c.h.b16 %v854
        %v994 = vunpack.c.l.b16 %v855
        %v995 = vunpack.c.h.b16 %v855
        %v996 = vunpack.c.l.b16 %v856
        %v997 = vunpack.c.h.b16 %v856
        %v998 = vunpack.c.l.b16 %v857
        %v999 = vunpack.c.h.b16 %v857
        %v1000 = vunpack.c.l.b16 %v858
        %v1001 = vunpack.c.h.b16 %v858
        %v1002 = vunpack.c.l.b16 %v859
        %v1003 = vunpack.c.h.b16 %v859
        %v1004 = vunpack.c.l.b16 %v860
        %v1005 = vunpack.c.h.b16 %v860
        %v1006 = vunpack.c.l.b16 %v861
        %v1007 = vunpack.c.h.b16 %v861
        %v1008 = vunpack.c.l.b16 %v862
        %v1009 = vunpack.c.h.b16 %v862
        %v1010 = vunpack.c.l.b16 %v863
        %v1011 = vunpack.c.h.b16 %v863
        %v1012 = vunpack.c.l.b16 %v864
        %v1013 = vunpack.c.h.b16 %v864
        %v1014 = vunpack.c.l.b16 %v865
        %v1015 = vunpack.c.h.b16 %v865
        %v1016 = vunpack.c.l.b16 %v866
        %v1017 = vunpack.c.h.b16 %v866
        %v1018 = vunpack.c.l.b16 %v867
        %v1019 = vunpack.c.h.b16 %v867
        %v1020 = vunpack.c.l.b16 %v868
        %v1021 = vunpack.c.h.b16 %v868
        %v1022 = vunpack.c.l.b16 %v869
        %v1023 = vunpack.c.h.b16 %v869
        %v1024 = vunpack.c.l.b16 %v870
        %v1025 = vunpack.c.h.b16 %v870
        %v1026 = vunpack.c.l.b16 %v871
        %v1027 = vunpack.c.h.b16 %v871
        %v1028 = vunpack.c.l.b16 %v872
        %v1029 = vunpack.c.h.b16 %v872
        %v1030 = vunpack.c.l.b16 %v873
        %v1031 = vunpack.c.h.b16 %v873
        %v1032 = vunpack.c.l.b16 %v874
        %v1033 = vunpack.c.h.b16 %v874
        %v1034 = vunpack.c.l.b16 %v875
        %v1035 = vunpack.c.h.b16 %v875
        %v1036 = vunpack.c.l.b16 %v876
        %v1037 = vunpack.c.h.b16 %v876
        %v1038 = vunpack.c.l.b16 %v877
        %v1039 = vunpack.c.h.b16 %v877
        %v1040 = vunpack.c.l.b16 %v878
        %v1041 = vunpack.c.h.b16 %v878
        %v1042 = vunpack.c.l.b16 %v879
        %v1043 = vunpack.c.h.b16 %v879
        %v1044 = vunpack.c.l.b16 %v880
        %v1045 = vunpack.c.h.b16 %v880
        %v1046 = vunpack.c.l.b16 %v881
        %v1047 = vunpack.c.h.b16 %v881
        %v1048 = vunpack.c.l.b16 %v882
        %v1049 = vunpack.c.h.b16 %v882
        %v1050 = vunpack.c.l.b16 %v883
        %v1051 = vunpack.c.h.b16 %v883
        %v1052 = vunpack.c.l.b16 %v884
        %v1053 = vunpack.c.h.b16 %v884
        %v1054 = vunpack.c.l.b16 %v885
        %v1055 = vunpack.c.h.b16 %v885
        %v1056 = vunpack.c.l.b16 %v886
        %v1057 = vunpack.c.h.b16 %v886
        %v1058 = vunpack.c.l.b16 %v887
        %v1059 = vunpack.c.h.b16 %v887
        %v1060 = vunpack.c.l.b16 %v888
        %v1061 = vunpack.c.h.b16 %v888
        %v1062 = vunpack.c.l.b16 %v889
        %v1063 = vunpack.c.h.b16 %v889
        %v1064 = vunpack.c.l.b16 %v890
        %v1065 = vunpack.c.h.b16 %v890
        %v1066 = vunpack.c.l.b16 %v891
        %v1067 = vunpack.c.h.b16 %v891
        %v1068 = vunpack.c.l.b16 %v892
        %v1069 = vunpack.c.h.b16 %v892
        %v1070 = vunpack.c.l.b16 %v893
        %v1071 = vunpack.c.h.b16 %v893
        %v1072 = vunpack.c.l.b16 %v894
        %v1073 = vunpack.c.h.b16 %v894
        %v1074 = vunpack.c.l.b16 %v895
        %v1075 = vunpack.c.h.b16 %v895
        %v1076 = vunpack.c.l.b16 %v896
        %v1077 = vunpack.c.h.b16 %v896
        %v1078 = vunpack.c.l.b16 %v897
        %v1079 = vunpack.c.h.b16 %v897
        %v1080 = vunpack.c.l.b16 %v898
        %v1081 = vunpack.c.h.b16 %v898
        %v1082 = vunpack.c.l.b16 %v899
        %v1083 = vunpack.c.h.b16 %v899
        %v1084 = vunpack.c.l.b16 %v900
        %v1085 = vunpack.c.h.b16 %v900
        %v1086 = vunpack.c.l.b16 %v901
        %v1087 = vunpack.c.h.b16 %v901
        %v1088 = vunpack.c.l.b16 %v902
        %v1089 = vunpack.c.h.b16 %v902
        %v1090 = vunpack.c.l.b16 %v903
        %v1091 = vunpack.c.h.b16 %v903
        %v1092 = vunpack.c.l.b16 %v904
        %v1093 = vunpack.c.h.b16 %v904
        %v1094 = vunpack.c.l.b16 %v905
        %v1095 = vunpack.c.h.b16 %v905
        %v1096 = vunpack.c.l.b16 %v906
        %v1097 = vunpack.c.h.b16 %v906
        %v1098 = vunpack.c.l.b16 %v907
        %v1099 = vunpack.c.h.b16 %v907
        %v1100 = vpack.c.b16 %v974, %v972
        %v1101 = vpack.c.b16 %v975, %v973
        %v1102 = vpack.c.b16 %v978, %v976
        %v1103 = vpack.c.b16 %v979, %v977
        %v1104 = vpack.c.b16 %v982, %v980
        %v1105 = vpack.c.b16 %v983, %v981
        %v1106 = vpack.c.b16 %v986, %v984
        %v1107 = vpack.c.b16 %v987, %v985
        %v1108 = vpack.c.b16 %v990, %v988
        %v1109 = vpack.c.b16 %v991, %v989
        %v1110 = vpack.c.b16 %v994, %v992
        %v1111 = vpack.c.b16 %v995, %v993
        %v1112 = vpack.c.b16 %v998, %v996
        %v1113 = vpack.c.b16 %v999, %v997
        %v1114 = vpack.c.b16 %v1002, %v1000
        %v1115 = vpack.c.b16 %v1003, %v1001
        %v1116 = vpack.c.b16 %v1006, %v1004
        %v1117 = vpack.c.b16 %v1007, %v1005
        %v1118 = vpack.c.b16 %v1010, %v1008
        %v1119 = vpack.c.b16 %v1011, %v1009
        %v1120 = vpack.c.b16 %v1014, %v1012
        %v1121 = vpack.c.b16 %v1015, %v1013
        %v1122 = vpack.c.b16 %v1018, %v1016
        %v1123 = vpack.c.b16 %v1019, %v1017
        %v1124 = vpack.c.b16 %v1022, %v1020
        %v1125 = vpack.c.b16 %v1023, %v1021
        %v1126 = vpack.c.b16 %v1026, %v1024
        %v1127 = vpack.c.b16 %v1027, %v1025
        %v1128 = vpack.c.b16 %v1030, %v1028
        %v1129 = vpack.c.b16 %v1031, %v1029
        %v1130 = vpack.c.b16 %v1034, %v1032
        %v1131 = vpack.c.b16 %v1035, %v1033
        %v1132 = vpack.c.b16 %v1038, %v1036
        %v1133 = vpack.c.b16 %v1039, %v1037
        %v1134 = vpack.c.b16 %v1042, %v1040
        %v1135 = vpack.c.b16 %v1043, %v1041
        %v1136 = vpack.c.b16 %v1046, %v1044
        %v1137 = vpack.c.b16 %v1047, %v1045
        %v1138 = vpack.c.b16 %v1050, %v1048
        %v1139 = vpack.c.b16 %v1051, %v1049
        %v1140 = vpack.c.b16 %v1054, %v1052
        %v1141 = vpack.c.b16 %v1055, %v1053
        %v1142 = vpack.c.b16 %v1058, %v1056
        %v1143 = vpack.c.b16 %v1059, %v1057
        %v1144 = vpack.c.b16 %v1062, %v1060
        %v1145 = vpack.c.b16 %v1063, %v1061
        %v1146 = vpack.c.b16 %v1066, %v1064
        %v1147 = vpack.c.b16 %v1067, %v1065
        %v1148 = vpack.c.b16 %v1070, %v1068
        %v1149 = vpack.c.b16 %v1071, %v1069
        %v1150 = vpack.c.b16 %v1074, %v1072
        %v1151 = vpack.c.b16 %v1075, %v1073
        %v1152 = vpack.c.b16 %v1078, %v1076
        %v1153 = vpack.c.b16 %v1079, %v1077
        %v1154 = vpack.c.b16 %v1082, %v1080
        %v1155 = vpack.c.b16 %v1083, %v1081
        %v1156 = vpack.c.b16 %v1086, %v1084
        %v1157 = vpack.c.b16 %v1087, %v1085
        %v1158 = vpack.c.b16 %v1090, %v1088
        %v1159 = vpack.c.b16 %v1091, %v1089
        %v1160 = vpack.c.b16 %v1094, %v1092
        %v1161 = vpack.c.b16 %v1095, %v1093
        %v1162 = vpack.c.b16 %v1098, %v1096
        %v1163 = vpack.c.b16 %v1099, %v1097
        %1228 = vmatprep.subr.bf16.mxu0 %v1101
        %1229 = vmatpush1.bf16.msra.mxu0 %v1100
        %1230 = vmatprep.subr.bf16.mxu0 %v1103
        %1231 = vmatpush1.bf16.msra.mxu0 %v1102
        %1232 = vmatprep.subr.bf16.mxu0 %v1105
        %1233 = vmatpush1.bf16.msra.mxu0 %v1104
        %1234 = vmatprep.subr.bf16.mxu0 %v1107
        %1235 = vmatpush1.bf16.msra.mxu0 %v1106
        %1236 = vmatprep.subr.bf16.mxu0 %v1109
        %1237 = vmatpush1.bf16.msra.mxu0 %v1108
        %1238 = vmatprep.subr.bf16.mxu0 %v1111
        %1239 = vmatpush1.bf16.msra.mxu0 %v1110
        %1240 = vmatprep.subr.bf16.mxu0 %v1113
        %1241 = vmatpush1.bf16.msra.mxu0 %v1112
        %1242 = vmatprep.subr.bf16.mxu0 %v1115
        %1243 = vmatpush1.bf16.msra.mxu0 %v1114
        %1244 = vmatprep.subr.bf16.mxu0 %v1117
        %1245 = vmatpush1.bf16.msra.mxu0 %v1116
        %1246 = vmatprep.subr.bf16.mxu0 %v1119
        %1247 = vmatpush1.bf16.msra.mxu0 %v1118
        %1248 = vmatprep.subr.bf16.mxu0 %v1121
        %1249 = vmatpush1.bf16.msra.mxu0 %v1120
        %1250 = vmatprep.subr.bf16.mxu0 %v1123
        %1251 = vmatpush1.bf16.msra.mxu0 %v1122
        %1252 = vmatprep.subr.bf16.mxu0 %v1125
        %1253 = vmatpush1.bf16.msra.mxu0 %v1124
        %1254 = vmatprep.subr.bf16.mxu0 %v1127
        %1255 = vmatpush1.bf16.msra.mxu0 %v1126
        %1256 = vmatprep.subr.bf16.mxu0 %v1129
        %1257 = vmatpush1.bf16.msra.mxu0 %v1128
        %1258 = vmatprep.subr.bf16.mxu0 %v1131
        %1259 = vmatpush1.bf16.msra.mxu0 %v1130
        %1260 = vmatprep.mubr.bf16.mxu0 %v841
        %1261 = vmatmul.mubr.bf16.gmra.mrb[0].mxu0 %v840
        %v1262 = vpop.f32.mrb[0].mxu0
        %v1263 = vadd.f32 0.0, %v1262
        %v1264 = vpop.f32.mrb[0].mxu0
        %v1265 = vadd.f32 0.0, %v1264
        %v1266 = vpop.f32.mrb[0].mxu0
        %v1267 = vpop.f32.mrb[0].mxu0
        %1268 = vdwg.mxu0
        %1269 = vmatprep.subr.bf16.mxu0 %v1133
        %1270 = vmatpush1.bf16.msra.mxu0 %v1132
        %1271 = vmatprep.subr.bf16.mxu0 %v1135
        %1272 = vmatpush1.bf16.msra.mxu0 %v1134
        %1273 = vmatprep.subr.bf16.mxu0 %v1137
        %1274 = vmatpush1.bf16.msra.mxu0 %v1136
        %1275 = vmatprep.subr.bf16.mxu0 %v1139
        %1276 = vmatpush1.bf16.msra.mxu0 %v1138
        %1277 = vmatprep.subr.bf16.mxu0 %v1141
        %1278 = vmatpush1.bf16.msra.mxu0 %v1140
        %1279 = vmatprep.subr.bf16.mxu0 %v1143
        %1280 = vmatpush1.bf16.msra.mxu0 %v1142
        %1281 = vmatprep.subr.bf16.mxu0 %v1145
        %1282 = vmatpush1.bf16.msra.mxu0 %v1144
        %1283 = vmatprep.subr.bf16.mxu0 %v1147
        %1284 = vmatpush1.bf16.msra.mxu0 %v1146
        %1285 = vmatprep.subr.bf16.mxu0 %v1149
        %1286 = vmatpush1.bf16.msra.mxu0 %v1148
        %1287 = vmatprep.subr.bf16.mxu0 %v1151
        %1288 = vmatpush1.bf16.msra.mxu0 %v1150
        %1289 = vmatprep.subr.bf16.mxu0 %v1153
        %1290 = vmatpush1.bf16.msra.mxu0 %v1152
        %1291 = vmatprep.subr.bf16.mxu0 %v1155
        %1292 = vmatpush1.bf16.msra.mxu0 %v1154
        %1293 = vmatprep.subr.bf16.mxu0 %v1157
        %1294 = vmatpush1.bf16.msra.mxu0 %v1156
        %1295 = vmatprep.subr.bf16.mxu0 %v1159
        %1296 = vmatpush1.bf16.msra.mxu0 %v1158
        %1297 = vmatprep.subr.bf16.mxu0 %v1161
        %1298 = vmatpush1.bf16.msra.mxu0 %v1160
        %1299 = vmatprep.subr.bf16.mxu0 %v1163
        %1300 = vmatpush1.bf16.msra.mxu0 %v1162
        %1301 = vmatprep.mubr.bf16.mxu0 %v843
        %1302 = vmatmul.mubr.bf16.gmra.mrb[0].mxu0 %v842
        %v1303 = vpop.f32.mrb[0].mxu0
        %v1304 = vadd.f32 %v1263, %v1303
        %v1305 = vpop.f32.mrb[0].mxu0
        %v1306 = vadd.f32 %v1265, %v1305
        %v1307 = vpop.f32.mrb[0].mxu0
        %v1308 = vpop.f32.mrb[0].mxu0
        %1309 = vdwg.mxu0
        %v1310 = vadd.f32 %v838, %v1304
        %v1311 = vadd.f32 %v839, %v1306
        %1312 = vst [vmem:[#allocation2] sm:$0xff] %v1310
        %1313 = vst [vmem:[#allocation2 + $0x8] sm:$0xff] %v1311
        // Predicated region
        $region65: #{tpu_custom_call.1} parent=47 // pred_check
          %p1314 = pneg %p336
        $region66: #{tpu_custom_call.1} parent=47 // pred_check_branch
          %1316 = sbr.rel (%p1314) target = $region68
        $region67: #{tpu_custom_call.1} parent=47 // pred_region
          %v1317 = vld [vmem:[#allocation2] sm:$0xff]
          %v1318 = vld [vmem:[#allocation2 + $0x8] sm:$0xff]
          %v1319 = vld [vmem:[%s4] sm:$0x3]
          %v1321 = vlaneseq
          %v1322 = vshrl.u32 %v1321, 7
          %v1323 = vsub.s32 0, %v1322
          %v1324 = vrot.slane %v1319, %v1323
          %v1325 = vlaneseq
          %v1326 = vshrl.u32 %v1325, 7
          %v1327 = vsub.s32 1, %v1326
          %v1328 = vrot.slane %v1319, %v1327
          %v1331 = vadd.f32 %v1317, %v1324
          %v1332 = vadd.f32 %v1318, %v1328
          %v1333 = vld [vmem:[%s297] sm:$0xff]
          %v1334 = vld [vmem:[%s297 + $0x8] sm:$0xff]
          %v1335 = vadd.f32 %v1331, %v1333
          %v1336 = vadd.f32 %v1332, %v1334
          %v1337 = vadd.f32 %v1335, %v1336
          %1338 = vadd.xlane.f32.xlu0 %v1337
          %v1339 = vpop.xlane.xlu0 %1338
          %v1340 = vrcp.pop 256.0
          %v1341 = vmul.f32 %v1339, %v1340
          %v1342 = vsub.f32 %v1335, %v1341
          %v1343 = vsub.f32 %v1336, %v1341
          %v1344 = vmul.f32 %v1342, %v1342
          %v1345 = vmul.f32 %v1343, %v1343
          %v1346 = vadd.f32 %v1344, %v1345
          %1347 = vadd.xlane.f32.xlu0 %v1346
          %v1348 = vpop.xlane.xlu0 %1347
          %v1349 = vmul.f32 %v1348, %v1340
          %v1350 = vadd.f32 %v1349, 1e-05
          %v1351 = vrsqrt.pop %v1350
          %v1352 = vmul.f32 %v1342, %v1351
          %v1353 = vmul.f32 %v1343, %v1351
          %v1354 = vld [vmem:[%s5] sm:$0x3]
          %v1356 = vlaneseq
          %v1357 = vshrl.u32 %v1356, 7
          %v1358 = vsub.s32 0, %v1357
          %v1359 = vrot.slane %v1354, %v1358
          %v1360 = vlaneseq
          %v1361 = vshrl.u32 %v1360, 7
          %v1362 = vsub.s32 1, %v1361
          %v1363 = vrot.slane %v1354, %v1362
          %v1366 = vmul.f32 %v1352, %v1359
          %v1367 = vmul.f32 %v1353, %v1363
          %v1368 = vld [vmem:[%s6] sm:$0x3]
          %v1370 = vlaneseq
          %v1371 = vshrl.u32 %v1370, 7
          %v1372 = vsub.s32 0, %v1371
          %v1373 = vrot.slane %v1368, %v1372
          %v1374 = vlaneseq
          %v1375 = vshrl.u32 %v1374, 7
          %v1376 = vsub.s32 1, %v1375
          %v1377 = vrot.slane %v1368, %v1376
          %v1380 = vadd.f32 %v1366, %v1373
          %v1381 = vadd.f32 %v1367, %v1377
          %1382 = vst [vmem:[%s335] sm:$0xff] %v1380
          %1383 = vst [vmem:[%s335 + $0x8] sm:$0xff] %v1381
        $region68: #{tpu_custom_call.1} parent=47 // pred_fallthru
          _
        %s1384 = sand.u32 %s197, 1
        %s1385 = scalar_lea.sflag [#allocation5], %s1384
        %s1386 = sand.u32 %s197, 1
        %s1387 = smul.addr %s1386, 16
        %s1388 = scalar_lea.vmem [#allocation9], %s1387
        // Predicated region
        $region69: #{tpu_custom_call.1} parent=47 // pred_check
          %p1389 = pneg %p207
        $region70: #{tpu_custom_call.1} parent=47 // pred_check_branch
          %1391 = sbr.rel (%p1389) target = $region72
        $region71: #{tpu_custom_call.1} parent=47 // pred_region
          %s1393 = ssub.s32 256, 256
          %1394 = vsyncadd %s1385, %s1393
          %s1395 = smul.addr %s29, 2
          %s1396 = smul.addr %s1395, 128
          %s1397 = scalar_lea.hbm %s7, %s1396
          %s1399 = sshll.u32 %s1388, 4
          %s1400 = int_to_ptr.vmem [resolvable:$true] %s1399
          %1402 = dma.vmem_to_hbm [thread:$0]  %s1400, 256, %s1397, %s1385
        $region72: #{tpu_custom_call.1} parent=47 // pred_fallthru
          _
      $region48: #{tpu_custom_call.1} parent=5 // pred_fallthru
        _
      %p1403 = scmp.le.s32.totalorder 2, %s20
      // Predicated region
      $region73: #{tpu_custom_call.1} parent=5 // pred_check
        %p1404 = pneg %p1403
      $region74: #{tpu_custom_call.1} parent=5 // pred_check_branch
        %1406 = sbr.rel (%p1404) target = $region76
      $region75: #{tpu_custom_call.1} parent=5 // pred_region
        %s1407 = ssub.s32 %s20, 2
        // Predicated region
        $region77: #{tpu_custom_call.1} parent=75 // pred_check
          %p1408 = pneg %p213
        $region78: #{tpu_custom_call.1} parent=75 // pred_check_branch
          %1410 = sbr.rel (%p1408) target = $region80
        $region79: #{tpu_custom_call.1} parent=75 // pred_region
          %s1411 = sand.u32 %s198, 1
          %s1412 = scalar_lea.sflag [#allocation5], %s1411
          %s1413 = sand.u32 %s198, 1
          %s1414 = smul.addr %s1413, 16
          %s1415 = scalar_lea.vmem [#allocation9], %s1414
          %1416 = dma.done %s1412, 256
        $region80: #{tpu_custom_call.1} parent=75 // pred_fallthru
          _
      $region76: #{tpu_custom_call.1} parent=5 // pred_fallthru
        _
    $region6: #{tpu_custom_call.1} parent=1 // loop_footer
      %s24 = sadd.s32 1, %s20
    $region7: #{tpu_custom_call.1} parent=1 // loop_footer_branch
      %19 = sbr.rel target = $region3
    $region8: #{tpu_custom_call.1} parent=1 // loop_exit
      _
    %1417 = vsyncpa [#allocation4], 1
    %s1418 = scalar_lea.sflag [#allocation4], 1
    %1419 = vsyncpa %s1418, 1
    %1420 = vsyncpa [#allocation7], 1
    %1421 = vsyncpa [#allocation5], 1
    %s1422 = scalar_lea.sflag [#allocation5], 1
    %1423 = vsyncpa %s1422, 1

</llo_original>
